<compile_context>
chip_gen: v7x
topology: tpu7x:2x2x1
jax: 0.10.0
libtpu: 0.0.40
codegen_flags: <defaults>
</compile_context>

<pallas_src>
import functools
import math

import jax
import jax.numpy as jnp
from jax.experimental import pallas as pl
from jax.experimental.pallas import tpu as pltpu


def _round_up(x, m):
    return -(-x // m) * m


def _cdiv(a, b):
    return -(-a // b)


# ------------------------------ Pallas kernel --------------------------------
def _conv_tile_kernel(x_ref, w_ref, b_ref, o_ref, *, k_h, n_q, s, th, w_tile):
    """One (image, row-tile) grid step of the direct convolution.

    x_ref : (1, S, th+Qh, Wc, S*C_in)     bf16  halo row slab (all H phases)
    w_ref : (K_h*Q, S*C_in, C_out_pad)    bf16  phase-embedded weights (resident)
    b_ref : (1, C_out_pad)                f32   bias row (resident)
    o_ref : (1, th*w_tile, C_out_pad)     f32   output rows (stored once)
    """
    sc = x_ref.shape[-1]
    c_out_pad = o_ref.shape[-1]

    acc = jnp.zeros((th * w_tile, c_out_pad), jnp.float32)
    for kh in range(k_h):                 # static, fully unrolled (<= K_h)
        r_h, q_h = kh % s, kh // s
        for q in range(n_q):              # static, fully unrolled (<= ceil(K_w/S))
            # Contiguous window; w_tile % 16 == 0 makes the bf16 collapse
            # (th, w_tile, SC) -> (th*w_tile, SC) tile-trivial (no relayout).
            lhs = x_ref[0, r_h, q_h:q_h + th, q:q + w_tile, :]
            lhs = lhs.reshape(th * w_tile, sc)
            acc = acc + jnp.dot(lhs, w_ref[kh * n_q + q],
                                preferred_element_type=jnp.float32)
    o_ref[0] = acc + b_ref[...]


# --------------------------- tiling / VMEM budgeting -------------------------
def _vmem_limit_bytes():
    """Generation-aware scoped-VMEM limit (v5e/v6e: 128 MiB, v7x: 64 MiB/TC)."""
    cap = 128 * 1024 * 1024
    try:
        info = pltpu.get_tpu_info()
        c = getattr(info, "vmem_capacity_bytes", None)
        if c:
            cap = int(c)
    except Exception:
        pass
    return max(32 * 1024 * 1024, min(100 * 1024 * 1024, int(cap * 0.70)))


def _choose_row_tile(*, h_out, n_images, s, qh, wc, sc, w_tile, c_out_pad,
                     w_vmem_bytes, vmem_limit):
    """Pick how many output-image rows each grid step processes."""
    wc_pad = _round_up(wc, 16)          # second-minor padding (bf16 tiles)
    sc_pad = _round_up(sc, 128)         # lane padding of the tiny contraction dim
    in_row = s * wc_pad * sc_pad * 2                       # bf16 input slab / row
    out_row = w_tile * c_out_pad * 4                       # f32 output rows
    acc_row = w_tile * c_out_pad * 4                       # in-kernel accumulator
    lhs_row = 2 * w_tile * sc_pad * 2                      # transient lhs slices
    per_row = 2 * in_row + 2 * out_row + acc_row + lhs_row
    fixed = (2 * w_vmem_bytes                              # double-buffered weights
             + 2 * c_out_pad * 4                           # bias
             + 2 * qh * in_row                             # halo rows per tile
             + (2 << 20))                                  # compiler scratch slack
    budget = max(per_row, vmem_limit - fixed)
    th = max(1, min(h_out, budget // per_row))
    # Keep >= 2 grid steps so the 'parallel' axis can shard across TensorCores.
    if n_images * _cdiv(h_out, th) < 2 and h_out >= 2:
        th = _cdiv(h_out, 2)
    return int(th)


# ----------------------------- pallas_call wrapper ----------------------------
def _pallas_conv_tiles(xt, w_q, bias_row, *, k_h, n_q, s, th, w_tile, vmem_limit):
    """xt: (NT, S, th+Qh, Wc, S*C_in) bf16 -> (NT, th*w_tile, C_out_pad) f32."""
    nt, s_, thq, wc, sc = xt.shape
    khq, sc2, c_out_pad = w_q.shape
    assert sc2 == sc and khq == k_h * n_q
    m_tile = th * w_tile

    kernel = functools.partial(_conv_tile_kernel, k_h=k_h, n_q=n_q, s=s,
                               th=th, w_tile=w_tile)

    flops = 2 * nt * m_tile * khq * sc * c_out_pad
    bytes_accessed = (xt.size * xt.dtype.itemsize
                      + w_q.size * w_q.dtype.itemsize
                      + bias_row.size * 4
                      + nt * m_tile * c_out_pad * 4)

    return pl.pallas_call(
        kernel,
        out_shape=jax.ShapeDtypeStruct((nt, m_tile, c_out_pad), jnp.float32),
        grid_spec=pltpu.PrefetchScalarGridSpec(
            num_scalar_prefetch=0,
            grid=(nt,),
            in_specs=[
                pl.BlockSpec((1, s_, thq, wc, sc), lambda i: (i, 0, 0, 0, 0)),
                pl.BlockSpec((khq, sc, c_out_pad), lambda i: (0, 0, 0)),
                pl.BlockSpec((1, c_out_pad), lambda i: (0, 0)),
            ],
            out_specs=pl.BlockSpec((1, m_tile, c_out_pad), lambda i: (i, 0, 0)),
        ),
        compiler_params=pltpu.CompilerParams(
            dimension_semantics=("parallel",),
            vmem_limit_bytes=int(vmem_limit),
        ),
        cost_estimate=pl.CostEstimate(
            flops=flops, transcendentals=0, bytes_accessed=bytes_accessed),
    )(xt, w_q, bias_row)


# -------------------------------- forward glue --------------------------------
@functools.partial(jax.jit,
                   static_argnames=("stride", "padding", "k_h", "k_w", "c_out"))
def _conv2d_forward_nchw(x, w_q, bias_row, *, stride, padding, k_h, k_w, c_out):
    n, c_in, h, w = x.shape
    s, p = stride, padding
    h_out = (h - k_h + 2 * p) // s + 1
    w_out = (w - k_w + 2 * p) // s + 1
    assert h_out > 0 and w_out > 0

    n_q = (k_w - 1) // s + 1            # W-direction taps per phase-folded position
    n_qh = (k_h - 1) // s + 1
    qh = n_qh - 1                       # extra halo rows per tile
    sc = s * c_in
    c_out_pad = w_q.shape[-1]
    w_tile = _round_up(w_out, 16)       # bf16 packing -> tile-trivial reshapes
    wc = w_tile + n_q - 1

    vmem_limit = _vmem_limit_bytes()
    w_vmem = k_h * n_q * _round_up(sc, 16) * c_out_pad * 2
    th = _choose_row_tile(h_out=h_out, n_images=n, s=s, qh=qh, wc=wc, sc=sc,
                          w_tile=w_tile, c_out_pad=c_out_pad,
                          w_vmem_bytes=w_vmem, vmem_limit=vmem_limit)
    n_tiles = _cdiv(h_out, th)
    hc = n_tiles * th + qh              # per-image rows after H-phase fold

    # NCHW -> NHWC, cast to bf16 BEFORE pad/rearrange so every materialized
    # intermediate is half-width.
    xh = jnp.transpose(x, (0, 2, 3, 1)).astype(jnp.bfloat16)

    target_h, target_w = hc * s, wc * s
    xp = jnp.pad(xh, ((0, 0),
                      (p, max(0, target_h - h - p)),
                      (p, max(0, target_w - w - p)),
                      (0, 0)))[:, :target_h, :target_w, :]

    # Fold the H and W stride phases: (N, hc, S, wc, S, C_in) -> (S, N, hc, wc, S*C_in).
    xs = xp.reshape(n, hc, s, wc, s, c_in).transpose(2, 0, 1, 3, 4, 5)
    xs = xs.reshape(s, n, hc, wc, sc)

    # Per-(image, row-tile) halo slabs: rows [t*th, t*th + th + qh) of every phase.
    row_idx = jnp.arange(n_tiles)[:, None] * th + jnp.arange(th + qh)[None, :]
    xt = jnp.take(xs, row_idx, axis=2)                     # (S, N, T, th+qh, wc, sc)
    xt = xt.transpose(1, 2, 0, 3, 4, 5).reshape(n * n_tiles, s, th + qh, wc, sc)

    out = _pallas_conv_tiles(xt, w_q, bias_row, k_h=k_h, n_q=n_q, s=s, th=th,
                             w_tile=w_tile, vmem_limit=vmem_limit)

    out = out.reshape(n, n_tiles * th, w_tile, c_out_pad)[:, :h_out, :w_out, :c_out]
    # Module contract is NCHW f32; a NHWC consumer could skip this relayout.
    return jnp.transpose(out, (0, 3, 1, 2))


# -------------------------------- Conv2d module -------------------------------
class Conv2dPallas:
    """Forward-pass-only reimplementation of the reference Conv2d module."""

    def __init__(self, in_channels, out_channels, kernel_size=3, stride=1,
                 padding=0, key=None, compute_dtype=jnp.bfloat16):
        assert stride > 0 and kernel_size > 0
        kernel_size = (kernel_size, kernel_size)
        if padding == 'same':
            assert stride == 1
            padding = (kernel_size[0] - 1) // 2
        self.in_channels = in_channels
        self.out_channels = out_channels
        self.kernel_size = kernel_size
        self.stride = stride
        self.padding = padding
        self.compute_dtype = compute_dtype

        fan_in = in_channels * kernel_size[0] * kernel_size[1]
        gain = (2.0 / (1 + (5 ** 0.5) ** 2)) ** 0.5
        std_weights = 3.0 ** 0.5 * (gain / fan_in ** 0.5)
        std_bias = 1 / fan_in ** 0.5

        if key is None:
            key = jax.random.PRNGKey(0)
        kw_key, kb_key = jax.random.split(key)
        self.weight = jax.random.uniform(
            kw_key, (out_channels, in_channels, *kernel_size),
            minval=-std_weights, maxval=std_weights, dtype=jnp.float32)
        self.bias = jax.random.uniform(
            kb_key, (out_channels,), minval=-std_bias, maxval=std_bias,
            dtype=jnp.float32)
        self._pack_params()

    def _pack_params(self):
        """Pre-pack weights/bias into the kernel's lane-dense, phase-folded layout."""
        k_h, k_w = self.kernel_size
        s = self.stride
        c_in, c_out = self.in_channels, self.out_channels
        c_out_pad = _round_up(c_out, 128)
        n_q = (k_w - 1) // s + 1
        wt = jnp.transpose(self.weight, (2, 3, 1, 0))   # (K_h, K_w, C_in, C_out)
        w_q = jnp.zeros((k_h, n_q, s * c_in, c_out_pad), jnp.float32)
        for kw in range(k_w):                           # embed col kw = q*S + r
            q, r = divmod(kw, s)
            w_q = w_q.at[:, q, r * c_in:(r + 1) * c_in, :c_out].set(wt[:, kw])
        self._w_q = w_q.reshape(k_h * n_q, s * c_in, c_out_pad).astype(
            self.compute_dtype)
        self._bias_row = jnp.zeros((1, c_out_pad), jnp.float32).at[
            0, :c_out].set(self.bias)

    def forward(self, x):
        """x: (N, C_in, H, W) f32 -> (N, C_out, H_out, W_out) f32."""
        assert x.shape[1] == self.in_channels
        return _conv2d_forward_nchw(
            x, self._w_q, self._bias_row,
            stride=self.stride, padding=self.padding,
            k_h=self.kernel_size[0], k_w=self.kernel_size[1],
            c_out=self.out_channels)

    __call__ = forward


# ------------------------------------ main ------------------------------------
def _check(conv, x, stride, padding):
    out = jax.block_until_ready(conv.forward(x))
    # Reference: same bf16-quantized inputs/weights, f32 accumulation.
    xr = x.astype(jnp.bfloat16).astype(jnp.float32)
    wr = conv.weight.astype(jnp.bfloat16).astype(jnp.float32)
    ref = jax.lax.conv_general_dilated(
        xr, wr, window_strides=(stride, stride),
        padding=[(padding, padding), (padding, padding)],
        dimension_numbers=("NCHW", "OIHW", "NCHW"),
        precision=jax.lax.Precision.HIGHEST)
    ref = ref + conv.bias.reshape(1, -1, 1, 1)
    assert out.shape == ref.shape, (out.shape, ref.shape)
    err = float(jnp.max(jnp.abs(out - ref)))
    assert err < 2e-3, err


if __name__ == "__main__":
    key = jax.random.PRNGKey(0)
    k_x1, k_p1, k_x2, k_p2 = jax.random.split(key, 4)

    # Config A: strided, padded conv.
    N, C_in, H, W = 2, 4, 16, 16
    C_out, K, S, P = 8, 3, 2, 1
    x1 = jax.random.normal(k_x1, (N, C_in, H, W), dtype=jnp.float32)
    conv1 = Conv2dPallas(C_in, C_out, kernel_size=K, stride=S, padding=P, key=k_p1)
    _check(conv1, x1, S, P)

    # Config B: stride-1 'same' conv (RGB-ish channels, non-multiple-of-8 C_out).
    x2 = jax.random.normal(k_x2, (2, 3, 16, 16), dtype=jnp.float32)
    conv2 = Conv2dPallas(3, 5, kernel_size=3, stride=1, padding='same', key=k_p2)
    _check(conv2, x2, 1, conv2.padding)

    print("KERNEL_OK")
</pallas_src>

<mosaic_0001>
module attributes {stable_mosaic.version = 11 : i64} {
  func.func @_conv_tile_kernel(%arg0: i32, %arg1: memref<1x2x9x17x8xbf16, #tpu.memory_space<vmem>>, %arg2: memref<6x8x128xbf16, #tpu.memory_space<vmem>>, %arg3: memref<1x128xf32, #tpu.memory_space<vmem>>, %arg4: memref<1x128x128xf32, #tpu.memory_space<vmem>>) attributes {dimension_semantics = [#tpu.dimension_semantics<parallel>], iteration_bounds = array<i64: 2>, scalar_prefetch = 0 : i64, scratch_operands = 0 : i64, tpu.core_type = #tpu.core_type<tc>, window_params = [{transform_indices = @transform_0, window_bounds = array<i64: 1, 2, 9, 17, 8>}, {pipeline_mode = #tpu.pipeline_mode<synchronous>, transform_indices = @transform_1, window_bounds = array<i64: 6, 8, 128>}, {pipeline_mode = #tpu.pipeline_mode<synchronous>, transform_indices = @transform_2, window_bounds = array<i64: 1, 128>}, {transform_indices = @transform_3, window_bounds = array<i64: 1, 128, 128>}]} {
    %cst = arith.constant 0.000000e+00 : f32
    %0 = vector.broadcast %cst : f32 to vector<128x128xf32>
    %c0 = arith.constant 0 : index
    %c0_0 = arith.constant 0 : index
    %c0_1 = arith.constant 0 : index
    %c0_2 = arith.constant 0 : index
    %c0_3 = arith.constant 0 : index
    %1 = vector.load %arg1[%c0, %c0_0, %c0_1, %c0_2, %c0_3] : memref<1x2x9x17x8xbf16, #tpu.memory_space<vmem>>, vector<1x1x8x16x8xbf16>
    %2 = vector.shape_cast %1 : vector<1x1x8x16x8xbf16> to vector<8x16x8xbf16>
    %3 = vector.shape_cast %2 : vector<8x16x8xbf16> to vector<128x8xbf16>
    %c0_4 = arith.constant 0 : index
    %c0_5 = arith.constant 0 : index
    %c0_6 = arith.constant 0 : index
    %4 = vector.load %arg2[%c0_4, %c0_5, %c0_6] : memref<6x8x128xbf16, #tpu.memory_space<vmem>>, vector<1x8x128xbf16>
    %5 = vector.shape_cast %4 : vector<1x8x128xbf16> to vector<8x128xbf16>
    %cst_7 = arith.constant dense<0.000000e+00> : vector<128x128xf32>
    %6 = tpu.matmul %3, %5, %cst_7 {dimension_numbers = #tpu.dot_dimension_numbers<[1], [0], [0], [1], [0, 0, 1, 1], [], []>} : vector<128x8xbf16>, vector<8x128xbf16>, vector<128x128xf32> -> vector<128x128xf32>
    %7 = arith.addf %0, %6 : vector<128x128xf32>
    %c0_8 = arith.constant 0 : index
    %c0_9 = arith.constant 0 : index
    %c0_10 = arith.constant 0 : index
    %c1 = arith.constant 1 : index
    %c0_11 = arith.constant 0 : index
    %8 = vector.load %arg1[%c0_8, %c0_9, %c0_10, %c1, %c0_11] : memref<1x2x9x17x8xbf16, #tpu.memory_space<vmem>>, vector<1x1x8x16x8xbf16>
    %9 = vector.shape_cast %8 : vector<1x1x8x16x8xbf16> to vector<8x16x8xbf16>
    %10 = vector.shape_cast %9 : vector<8x16x8xbf16> to vector<128x8xbf16>
    %c1_12 = arith.constant 1 : index
    %c0_13 = arith.constant 0 : index
    %c0_14 = arith.constant 0 : index
    %11 = vector.load %arg2[%c1_12, %c0_13, %c0_14] : memref<6x8x128xbf16, #tpu.memory_space<vmem>>, vector<1x8x128xbf16>
    %12 = vector.shape_cast %11 : vector<1x8x128xbf16> to vector<8x128xbf16>
    %cst_15 = arith.constant dense<0.000000e+00> : vector<128x128xf32>
    %13 = tpu.matmul %10, %12, %cst_15 {dimension_numbers = #tpu.dot_dimension_numbers<[1], [0], [0], [1], [0, 0, 1, 1], [], []>} : vector<128x8xbf16>, vector<8x128xbf16>, vector<128x128xf32> -> vector<128x128xf32>
    %14 = arith.addf %7, %13 : vector<128x128xf32>
    %c0_16 = arith.constant 0 : index
    %c1_17 = arith.constant 1 : index
    %c0_18 = arith.constant 0 : index
    %c0_19 = arith.constant 0 : index
    %c0_20 = arith.constant 0 : index
    %15 = vector.load %arg1[%c0_16, %c1_17, %c0_18, %c0_19, %c0_20] : memref<1x2x9x17x8xbf16, #tpu.memory_space<vmem>>, vector<1x1x8x16x8xbf16>
    %16 = vector.shape_cast %15 : vector<1x1x8x16x8xbf16> to vector<8x16x8xbf16>
    %17 = vector.shape_cast %16 : vector<8x16x8xbf16> to vector<128x8xbf16>
    %c2 = arith.constant 2 : index
    %c0_21 = arith.constant 0 : index
    %c0_22 = arith.constant 0 : index
    %18 = vector.load %arg2[%c2, %c0_21, %c0_22] : memref<6x8x128xbf16, #tpu.memory_space<vmem>>, vector<1x8x128xbf16>
    %19 = vector.shape_cast %18 : vector<1x8x128xbf16> to vector<8x128xbf16>
    %cst_23 = arith.constant dense<0.000000e+00> : vector<128x128xf32>
    %20 = tpu.matmul %17, %19, %cst_23 {dimension_numbers = #tpu.dot_dimension_numbers<[1], [0], [0], [1], [0, 0, 1, 1], [], []>} : vector<128x8xbf16>, vector<8x128xbf16>, vector<128x128xf32> -> vector<128x128xf32>
    %21 = arith.addf %14, %20 : vector<128x128xf32>
    %c0_24 = arith.constant 0 : index
    %c1_25 = arith.constant 1 : index
    %c0_26 = arith.constant 0 : index
    %c1_27 = arith.constant 1 : index
    %c0_28 = arith.constant 0 : index
    %22 = vector.load %arg1[%c0_24, %c1_25, %c0_26, %c1_27, %c0_28] : memref<1x2x9x17x8xbf16, #tpu.memory_space<vmem>>, vector<1x1x8x16x8xbf16>
    %23 = vector.shape_cast %22 : vector<1x1x8x16x8xbf16> to vector<8x16x8xbf16>
    %24 = vector.shape_cast %23 : vector<8x16x8xbf16> to vector<128x8xbf16>
    %c3 = arith.constant 3 : index
    %c0_29 = arith.constant 0 : index
    %c0_30 = arith.constant 0 : index
    %25 = vector.load %arg2[%c3, %c0_29, %c0_30] : memref<6x8x128xbf16, #tpu.memory_space<vmem>>, vector<1x8x128xbf16>
    %26 = vector.shape_cast %25 : vector<1x8x128xbf16> to vector<8x128xbf16>
    %cst_31 = arith.constant dense<0.000000e+00> : vector<128x128xf32>
    %27 = tpu.matmul %24, %26, %cst_31 {dimension_numbers = #tpu.dot_dimension_numbers<[1], [0], [0], [1], [0, 0, 1, 1], [], []>} : vector<128x8xbf16>, vector<8x128xbf16>, vector<128x128xf32> -> vector<128x128xf32>
    %28 = arith.addf %21, %27 : vector<128x128xf32>
    %c0_32 = arith.constant 0 : index
    %c0_33 = arith.constant 0 : index
    %c1_34 = arith.constant 1 : index
    %c0_35 = arith.constant 0 : index
    %c0_36 = arith.constant 0 : index
    %29 = vector.load %arg1[%c0_32, %c0_33, %c1_34, %c0_35, %c0_36] : memref<1x2x9x17x8xbf16, #tpu.memory_space<vmem>>, vector<1x1x8x16x8xbf16>
    %30 = vector.shape_cast %29 : vector<1x1x8x16x8xbf16> to vector<8x16x8xbf16>
    %31 = vector.shape_cast %30 : vector<8x16x8xbf16> to vector<128x8xbf16>
    %c4 = arith.constant 4 : index
    %c0_37 = arith.constant 0 : index
    %c0_38 = arith.constant 0 : index
    %32 = vector.load %arg2[%c4, %c0_37, %c0_38] : memref<6x8x128xbf16, #tpu.memory_space<vmem>>, vector<1x8x128xbf16>
    %33 = vector.shape_cast %32 : vector<1x8x128xbf16> to vector<8x128xbf16>
    %cst_39 = arith.constant dense<0.000000e+00> : vector<128x128xf32>
    %34 = tpu.matmul %31, %33, %cst_39 {dimension_numbers = #tpu.dot_dimension_numbers<[1], [0], [0], [1], [0, 0, 1, 1], [], []>} : vector<128x8xbf16>, vector<8x128xbf16>, vector<128x128xf32> -> vector<128x128xf32>
    %35 = arith.addf %28, %34 : vector<128x128xf32>
    %c0_40 = arith.constant 0 : index
    %c0_41 = arith.constant 0 : index
    %c1_42 = arith.constant 1 : index
    %c1_43 = arith.constant 1 : index
    %c0_44 = arith.constant 0 : index
    %36 = vector.load %arg1[%c0_40, %c0_41, %c1_42, %c1_43, %c0_44] : memref<1x2x9x17x8xbf16, #tpu.memory_space<vmem>>, vector<1x1x8x16x8xbf16>
    %37 = vector.shape_cast %36 : vector<1x1x8x16x8xbf16> to vector<8x16x8xbf16>
    %38 = vector.shape_cast %37 : vector<8x16x8xbf16> to vector<128x8xbf16>
    %c5 = arith.constant 5 : index
    %c0_45 = arith.constant 0 : index
    %c0_46 = arith.constant 0 : index
    %39 = vector.load %arg2[%c5, %c0_45, %c0_46] : memref<6x8x128xbf16, #tpu.memory_space<vmem>>, vector<1x8x128xbf16>
    %40 = vector.shape_cast %39 : vector<1x8x128xbf16> to vector<8x128xbf16>
    %cst_47 = arith.constant dense<0.000000e+00> : vector<128x128xf32>
    %41 = tpu.matmul %38, %40, %cst_47 {dimension_numbers = #tpu.dot_dimension_numbers<[1], [0], [0], [1], [0, 0, 1, 1], [], []>} : vector<128x8xbf16>, vector<8x128xbf16>, vector<128x128xf32> -> vector<128x128xf32>
    %42 = arith.addf %35, %41 : vector<128x128xf32>
    %c0_48 = arith.constant 0 : index
    %c0_49 = arith.constant 0 : index
    %43 = vector.load %arg3[%c0_48, %c0_49] : memref<1x128xf32, #tpu.memory_space<vmem>>, vector<1x128xf32>
    %44 = vector.broadcast %43 : vector<1x128xf32> to vector<128x128xf32>
    %45 = arith.addf %42, %44 : vector<128x128xf32>
    %c0_50 = arith.constant 0 : index
    %c0_51 = arith.constant 0 : index
    %c0_52 = arith.constant 0 : index
    %46 = vector.load %arg4[%c0_50, %c0_51, %c0_52] : memref<1x128x128xf32, #tpu.memory_space<vmem>>, vector<1x128x128xf32>
    %47 = vector.shape_cast %46 : vector<1x128x128xf32> to vector<128x128xf32>
    %48 = vector.shape_cast %45 : vector<128x128xf32> to vector<1x128x128xf32>
    tpu.vector_store %arg4[%c0_50, %c0_51, %c0_52], %48 {strides = array<i32>} : memref<1x128x128xf32, #tpu.memory_space<vmem>>, vector<1x128x128xf32>,
    return
  }
  func.func @transform_0(%arg0: i32) -> (i32, i32, i32, i32, i32) {
    %c0_i32 = arith.constant 0 : i32
    %c0_i32_0 = arith.constant 0 : i32
    %c0_i32_1 = arith.constant 0 : i32
    %c0_i32_2 = arith.constant 0 : i32
    %c0_i32_3 = arith.constant 0 : i32
    return %arg0, %c0_i32, %c0_i32_0, %c0_i32_1, %c0_i32_2 : i32, i32, i32, i32, i32
  }
  func.func @transform_1(%arg0: i32) -> (i32, i32, i32) {
    %c0_i32 = arith.constant 0 : i32
    %c0_i32_0 = arith.constant 0 : i32
    %c0_i32_1 = arith.constant 0 : i32
    %c0_i32_2 = arith.constant 0 : i32
    return %c0_i32, %c0_i32_0, %c0_i32_1 : i32, i32, i32
  }
  func.func @transform_2(%arg0: i32) -> (i32, i32) {
    %c0_i32 = arith.constant 0 : i32
    %c0_i32_0 = arith.constant 0 : i32
    %c0_i32_1 = arith.constant 0 : i32
    return %c0_i32, %c0_i32_0 : i32, i32
  }
  func.func @transform_3(%arg0: i32) -> (i32, i32, i32) {
    %c0_i32 = arith.constant 0 : i32
    %c0_i32_0 = arith.constant 0 : i32
    %c0_i32_1 = arith.constant 0 : i32
    return %arg0, %c0_i32, %c0_i32_0 : i32, i32, i32
  }
}

</mosaic_0001>

<llo_original>
// kernel: _conv2d_forward_nchw.1
$region0: #{_conv2d_forward_nchw.1}
  #allocation0 [shape = 'u32[]', space=smem, size = 0x4, offset = 0x4, fixed_abs, tag = 'smem constant byte address 0x4 - core index']
  #allocation1 [shape = 'u32[144,128]{1,0:T(1,128)}', space=vmem, size = 0x12000, scoped, tag = 'internal scratch']
  %s0 = inlined_call_operand.hbm [shape: bf16[2,2,9,17,8], index: 0, kind: input, shape index: {}]
  %s1 = inlined_call_operand.hbm [shape: bf16[6,8,128], index: 1, kind: input, shape index: {}]
  %s2 = inlined_call_operand.hbm [shape: f32[1,128], index: 2, kind: input, shape index: {}]
  %s3 = inlined_call_operand.hbm [shape: f32[2,128,128], index: 3, kind: output, shape index: {}]
  %s4 = sld [smem:[#allocation0]]
  $region57: #{_conv2d_forward_nchw.1} parent=0
    _
  %s6 = ssub.s32 1, %s4
  %s7 = scalar_select 0, %s6, %s4
  $region1: #{_conv2d_forward_nchw.1} parent=0
    #allocation2 [shape = 'u8[221184]{0}', space=vmem, size = 0x36000, scoped, tag = 'input window, operand 0']
    #allocation3 [shape = 's32[2]{0}', space=sflag, size = 0x8, scoped, tag = 'scoped memory for _conv2d_forward_nchw.1']
    #allocation4 [shape = 's32[2]{0}', space=sflag, size = 0x8, scoped, tag = 'scoped memory for _conv2d_forward_nchw.1']
    #allocation5 [shape = 'u8[12288]{0}', space=vmem, size = 0x3000, scoped, tag = 'input window, operand 1, single buffered']
    #allocation6 [shape = 's32[1]{0}', space=sflag, size = 0x4, scoped, tag = 'scoped memory for _conv2d_forward_nchw.1']
    #allocation7 [shape = 'u8[512]{0}', space=vmem, size = 0x400, scoped, tag = 'input window, operand 2, single buffered']
    #allocation8 [shape = 'u8[131072]{0}', space=vmem, size = 0x20000, scoped, tag = 'output window, operand 0']
    %8 = vsyncpa [#allocation3], 0
    %s9 = scalar_lea.sflag [#allocation3], 1
    %10 = vsyncpa %s9, 0
    %11 = vsyncpa [#allocation6], 0
    %12 = vsyncpa [#allocation4], 0
    %s13 = scalar_lea.sflag [#allocation4], 1
    %14 = vsyncpa %s13, 0
    loop: start=0, step=1, limit=4
    $region2: #{_conv2d_forward_nchw.1} parent=1 // loop_pre_header
      _
    $region3: #{_conv2d_forward_nchw.1} parent=1 // loop_header
      %s16 = sphi 0, %s20
      %p17 = scmp.ge.s32.totalorder %s16, 4
      %s26 = sphi 0, %s28
      %s29 = sphi 0, %s26
      %s30 = sphi 0, %s29
      %s46 = sphi 0, %s30
      %s50 = sphi 0, %s50
      %s52 = sphi 0, %s50
      %s53 = sphi 0, %s52
      %s67 = sphi 0, %s53
      %s71 = sphi 0, %s71
      %s73 = sphi 0, %s71
      %s74 = sphi 0, %s73
      %s88 = sphi 0, %s74
      %s94 = sphi 0, %s96
      %s97 = sphi 0, %s94
      %s98 = sphi 0, %s97
      %s114 = sphi 0, %s98
    $region4: #{_conv2d_forward_nchw.1} parent=1 // loop_header_branch
      %19 = sbr.rel (%p17) target = $region8
    $region5: #{_conv2d_forward_nchw.1} parent=1 // loop_body
      %s21 = ssub.s32 %s16, 1
      %s22 = ssub.s32 %s16, 2
      %s23 = sadd.s32 %s16, 1
      %s24 = ssub.s32 %s16, %s23
      %p25 = scmp.eq.s32.totalorder %s24, 0
      %s27 = sadd.s32 %s26, 1
      %s28 = scalar_select %p25, %s26, %s27
      %p31 = pneg %p25
      %p32 = scmp.eq.s32.totalorder %s16, 1
      %p33 = por %p31, %p32
      %p34 = scmp.ne.s32.totalorder %s26, %s29
      %p35 = scmp.eq.s32.totalorder %s16, 0
      %p36 = por %p34, %p35
      %p37 = scmp.ne.s32.totalorder %s26, %s29
      %p38 = scmp.eq.s32.totalorder %s21, 1
      %p39 = por %p37, %p38
      %p40 = scmp.ne.s32.totalorder %s29, %s30
      %p41 = scmp.eq.s32.totalorder %s21, 0
      %p42 = por %p40, %p41
      %p43 = scmp.ne.s32.totalorder %s29, %s30
      %p44 = scmp.eq.s32.totalorder %s22, 1
      %p45 = por %p43, %p44
      %p47 = scmp.ne.s32.totalorder %s30, %s46
      %p48 = scmp.eq.s32.totalorder %s22, 0
      %p49 = por %p47, %p48
      %s51 = sadd.s32 %s50, 1
      %p54 = scmp.eq.s32.totalorder %s16, 1
      %p55 = scmp.ne.s32.totalorder %s50, %s52
      %p56 = scmp.eq.s32.totalorder %s16, 0
      %p57 = por %p55, %p56
      %p58 = scmp.ne.s32.totalorder %s50, %s52
      %p59 = scmp.eq.s32.totalorder %s21, 1
      %p60 = por %p58, %p59
      %p61 = scmp.ne.s32.totalorder %s52, %s53
      %p62 = scmp.eq.s32.totalorder %s21, 0
      %p63 = por %p61, %p62
      %p64 = scmp.ne.s32.totalorder %s52, %s53
      %p65 = scmp.eq.s32.totalorder %s22, 1
      %p66 = por %p64, %p65
      %p68 = scmp.ne.s32.totalorder %s53, %s67
      %p69 = scmp.eq.s32.totalorder %s22, 0
      %p70 = por %p68, %p69
      %s72 = sadd.s32 %s71, 1
      %p75 = scmp.eq.s32.totalorder %s16, 1
      %p76 = scmp.ne.s32.totalorder %s71, %s73
      %p77 = scmp.eq.s32.totalorder %s16, 0
      %p78 = por %p76, %p77
      %p79 = scmp.ne.s32.totalorder %s71, %s73
      %p80 = scmp.eq.s32.totalorder %s21, 1
      %p81 = por %p79, %p80
      %p82 = scmp.ne.s32.totalorder %s73, %s74
      %p83 = scmp.eq.s32.totalorder %s21, 0
      %p84 = por %p82, %p83
      %p85 = scmp.ne.s32.totalorder %s73, %s74
      %p86 = scmp.eq.s32.totalorder %s22, 1
      %p87 = por %p85, %p86
      %p89 = scmp.ne.s32.totalorder %s74, %s88
      %p90 = scmp.eq.s32.totalorder %s22, 0
      %p91 = por %p89, %p90
      %s92 = ssub.s32 %s16, %s23
      %p93 = scmp.eq.s32.totalorder %s92, 0
      %s95 = sadd.s32 %s94, 1
      %s96 = scalar_select %p93, %s94, %s95
      %p99 = pneg %p93
      %p100 = scmp.eq.s32.totalorder %s16, 1
      %p101 = por %p99, %p100
      %p102 = scmp.ne.s32.totalorder %s94, %s97
      %p103 = scmp.eq.s32.totalorder %s16, 0
      %p104 = por %p102, %p103
      %p105 = scmp.ne.s32.totalorder %s94, %s97
      %p106 = scmp.eq.s32.totalorder %s21, 1
      %p107 = por %p105, %p106
      %p108 = scmp.ne.s32.totalorder %s97, %s98
      %p109 = scmp.eq.s32.totalorder %s21, 0
      %p110 = por %p108, %p109
      %p111 = scmp.ne.s32.totalorder %s97, %s98
      %p112 = scmp.eq.s32.totalorder %s22, 1
      %p113 = por %p111, %p112
      %p115 = scmp.ne.s32.totalorder %s98, %s114
      %p116 = scmp.eq.s32.totalorder %s22, 0
      %p117 = por %p115, %p116
      %p118 = scmp.le.s32.totalorder 1, %s16
      %p119 = scmp.lt.s32.totalorder %s16, 3
      %p120 = pnand %p118, %p119
      %p121 = pneg %p120
      // Predicated region
      $region9: #{_conv2d_forward_nchw.1} parent=5 // pred_check
        _
      $region10: #{_conv2d_forward_nchw.1} parent=5 // pred_check_branch
        %123 = sbr.rel (%p120) target = $region12
      $region11: #{_conv2d_forward_nchw.1} parent=5 // pred_region
        %s124 = ssub.s32 %s16, 1
        // Predicated region
        $region13: #{_conv2d_forward_nchw.1} parent=11 // pred_check
          %p125 = pneg %p63
        $region14: #{_conv2d_forward_nchw.1} parent=11 // pred_check_branch
          %127 = sbr.rel (%p125) target = $region16
        $region15: #{_conv2d_forward_nchw.1} parent=11 // pred_region
          %s129 = ssub.s32 384, 384
          %130 = vsyncadd [#allocation6], %s129
          %s131 = sshll.u32 [#allocation5], 4
          %s132 = int_to_ptr.vmem [resolvable:$true] %s131
          %137 = dma.hbm_to_vmem [thread:$0]  %s1, 384, %s132, [#allocation6], 64, 64, 4
        $region16: #{_conv2d_forward_nchw.1} parent=11 // pred_fallthru
          _
        // Predicated region
        $region17: #{_conv2d_forward_nchw.1} parent=11 // pred_check
          %p138 = pneg %p84
        $region18: #{_conv2d_forward_nchw.1} parent=11 // pred_check_branch
          %140 = sbr.rel (%p138) target = $region20
        $region19: #{_conv2d_forward_nchw.1} parent=11 // pred_region
          %s142 = ssub.s32 16, 16
          %143 = vsyncadd [#allocation6], %s142
          %s145 = sshll.u32 [#allocation7], 4
          %s146 = int_to_ptr.vmem [resolvable:$true] %s145
          %148 = dma.hbm_to_vmem [thread:$0]  %s2, 16, %s146, [#allocation6]
        $region20: #{_conv2d_forward_nchw.1} parent=11 // pred_fallthru
          _
      $region12: #{_conv2d_forward_nchw.1} parent=5 // pred_fallthru
        _
      %p149 = scmp.lt.s32.totalorder %s16, 2
      // Predicated region
      $region21: #{_conv2d_forward_nchw.1} parent=5 // pred_check
        %p150 = pneg %p149
      $region22: #{_conv2d_forward_nchw.1} parent=5 // pred_check_branch
        %152 = sbr.rel (%p150) target = $region24
      $region23: #{_conv2d_forward_nchw.1} parent=5 // pred_region
        // Predicated region
        $region25: #{_conv2d_forward_nchw.1} parent=23 // pred_check
          %p153 = pneg %p36
        $region26: #{_conv2d_forward_nchw.1} parent=23 // pred_check_branch
          %155 = sbr.rel (%p153) target = $region28
        $region27: #{_conv2d_forward_nchw.1} parent=23 // pred_region
          %s156 = sand.u32 %s26, 1
          %s157 = scalar_lea.sflag [#allocation3], %s156
          %s158 = sand.u32 %s26, 1
          %s159 = smul.addr %s158, 216
          %s160 = scalar_lea.vmem [#allocation2], %s159
          %s162 = ssub.s32 3456, 3456
          %163 = vsyncadd %s157, %s162
          %s164 = smul.addr %s16, 54
          %s165 = smul.addr %s164, 64
          %s166 = scalar_lea.hbm %s0, %s165
          %s167 = sshll.u32 %s160, 4
          %s168 = int_to_ptr.vmem [resolvable:$true] %s167
          %173 = dma.hbm_to_vmem [thread:$0]  %s166, 3456, %s168, %s157, 64, 64, 4
        $region28: #{_conv2d_forward_nchw.1} parent=23 // pred_fallthru
          _
      $region24: #{_conv2d_forward_nchw.1} parent=5 // pred_fallthru
        _
      %p174 = scmp.le.s32.totalorder 1, %s16
      %p175 = scmp.lt.s32.totalorder %s16, 3
      %p176 = pnand %p174, %p175
      %p177 = pneg %p176
      // Predicated region
      $region29: #{_conv2d_forward_nchw.1} parent=5 // pred_check
        _
      $region30: #{_conv2d_forward_nchw.1} parent=5 // pred_check_branch
        %179 = sbr.rel (%p176) target = $region32
      $region31: #{_conv2d_forward_nchw.1} parent=5 // pred_region
        %s180 = ssub.s32 %s16, 1
        %s181 = sand.u32 %s29, 1
        %s182 = scalar_lea.sflag [#allocation3], %s181
        %s183 = sand.u32 %s29, 1
        %s184 = smul.addr %s183, 216
        %s185 = scalar_lea.vmem [#allocation2], %s184
        // Predicated region
        $region33: #{_conv2d_forward_nchw.1} parent=31 // pred_check
          %p186 = pneg %p42
        $region34: #{_conv2d_forward_nchw.1} parent=31 // pred_check_branch
          %188 = sbr.rel (%p186) target = $region36
        $region35: #{_conv2d_forward_nchw.1} parent=31 // pred_region
          %189 = dma.done %s182, 3456
        $region36: #{_conv2d_forward_nchw.1} parent=31 // pred_fallthru
          _
        // Predicated region
        $region37: #{_conv2d_forward_nchw.1} parent=31 // pred_check
          %p190 = pneg %p63
        $region38: #{_conv2d_forward_nchw.1} parent=31 // pred_check_branch
          %192 = sbr.rel (%p190) target = $region40
        $region39: #{_conv2d_forward_nchw.1} parent=31 // pred_region
          %193 = dma.done [#allocation6], 384
        $region40: #{_conv2d_forward_nchw.1} parent=31 // pred_fallthru
          _
        // Predicated region
        $region41: #{_conv2d_forward_nchw.1} parent=31 // pred_check
          %p194 = pneg %p84
        $region42: #{_conv2d_forward_nchw.1} parent=31 // pred_check_branch
          %196 = sbr.rel (%p194) target = $region44
        $region43: #{_conv2d_forward_nchw.1} parent=31 // pred_region
          %197 = dma.done [#allocation6], 16
        $region44: #{_conv2d_forward_nchw.1} parent=31 // pred_fallthru
          _
        %s198 = sand.u32 %s29, 1
        %s199 = scalar_lea.sflag [#allocation3], %s198
        %s200 = sand.u32 %s29, 1
        %s201 = smul.addr %s200, 216
        %s202 = scalar_lea.vmem [#allocation2], %s201
        %p203 = pneg %p42
        %p204 = pneg %p39
        %p205 = pneg %p63
        %p206 = pneg %p60
        %p207 = pneg %p84
        %p208 = pneg %p81
        %p209 = pneg %p110
        %p210 = pneg %p107
        %s211 = sand.u32 %s97, 1
        %s212 = scalar_lea.sflag [#allocation4], %s211
        %s213 = sand.u32 %s97, 1
        %s214 = smul.addr %s213, 128
        %s215 = scalar_lea.vmem [#allocation8], %s214
        %v217 = vld [vmem:[%s185] sm:$0xf]
        %v218 = vld [vmem:[%s185 + $0x4] sm:$0xf]
        %v219 = vld [vmem:[%s185 + $0xc] sm:$0xf]
        %v220 = vld [vmem:[%s185 + $0x10] sm:$0xf]
        %v221 = vld [vmem:[%s185 + $0x18] sm:$0xf]
        %v222 = vld [vmem:[%s185 + $0x1c] sm:$0xf]
        %v223 = vld [vmem:[%s185 + $0x24] sm:$0xf]
        %v224 = vld [vmem:[%s185 + $0x28] sm:$0xf]
        %v225 = vld [vmem:[%s185 + $0x30] sm:$0xf]
        %v226 = vld [vmem:[%s185 + $0x34] sm:$0xf]
        %v227 = vld [vmem:[%s185 + $0x3c] sm:$0xf]
        %v228 = vld [vmem:[%s185 + $0x40] sm:$0xf]
        %v229 = vld [vmem:[%s185 + $0x48] sm:$0xf]
        %v230 = vld [vmem:[%s185 + $0x4c] sm:$0xf]
        %v231 = vld [vmem:[%s185 + $0x54] sm:$0xf]
        %v232 = vld [vmem:[%s185 + $0x58] sm:$0xf]
        %v233 = vld [vmem:[#allocation5] sm:$0xf]
        %v234 = vld [vmem:[%s185 + $0x8] sm:$0x1]
        %v235 = vld [vmem:[%s185 + $0x14] sm:$0x1]
        %v236 = vld [vmem:[%s185 + $0x20] sm:$0x1]
        %v237 = vld [vmem:[%s185 + $0x2c] sm:$0x1]
        %v238 = vld [vmem:[%s185 + $0x38] sm:$0x1]
        %v239 = vld [vmem:[%s185 + $0x44] sm:$0x1]
        %v240 = vld [vmem:[%s185 + $0x50] sm:$0x1]
        %v241 = vld [vmem:[%s185 + $0x5c] sm:$0x1]
        %vm242 = vsmask.f32 3328
        %vm243 = vsmask.f32 7440
        %vm244 = vmor %vm242, %vm243
        %v246 = vshrl.u32 %v217, 16
        %v248 = vrot.slane %v246, 4
        %v249 = vshll.u32 %v217, 16
        %v251 = vrot.slane %v249, 5
        %v252 = vor.u32 %v248, %v251
        %v253 = vrot.slane %v252, 4
        %v255 = vshll.u32 %v218, 16
        %v257 = vrot.slane %v255, 5
        %v258 = vsel %vm244, %v253, %v257
        %v259 = vshrl.u32 %v218, 16
        %v261 = vrot.slane %v259, 4
        %v262 = vor.u32 %v261, %v257
        %v263 = vrot.slane %v262, 4
        %v265 = vshll.u32 %v234, 16
        %v267 = vrot.slane %v265, 5
        %v268 = vsel %vm244, %v263, %v267
        %v270 = vshrl.u32 %v219, 16
        %v272 = vrot.slane %v270, 4
        %v273 = vshll.u32 %v219, 16
        %v275 = vrot.slane %v273, 5
        %v276 = vor.u32 %v272, %v275
        %v277 = vrot.slane %v276, 4
        %v279 = vshll.u32 %v220, 16
        %v281 = vrot.slane %v279, 5
        %v282 = vsel %vm244, %v277, %v281
        %v283 = vshrl.u32 %v220, 16
        %v285 = vrot.slane %v283, 4
        %v286 = vor.u32 %v285, %v281
        %v287 = vrot.slane %v286, 4
        %v289 = vshll.u32 %v235, 16
        %v291 = vrot.slane %v289, 5
        %v292 = vsel %vm244, %v287, %v291
        %v294 = vshrl.u32 %v221, 16
        %v296 = vrot.slane %v294, 4
        %v297 = vshll.u32 %v221, 16
        %v299 = vrot.slane %v297, 5
        %v300 = vor.u32 %v296, %v299
        %v301 = vrot.slane %v300, 4
        %v303 = vshll.u32 %v222, 16
        %v305 = vrot.slane %v303, 5
        %v306 = vsel %vm244, %v301, %v305
        %v307 = vshrl.u32 %v222, 16
        %v309 = vrot.slane %v307, 4
        %v310 = vor.u32 %v309, %v305
        %v311 = vrot.slane %v310, 4
        %v313 = vshll.u32 %v236, 16
        %v315 = vrot.slane %v313, 5
        %v316 = vsel %vm244, %v311, %v315
        %v318 = vshrl.u32 %v223, 16
        %v320 = vrot.slane %v318, 4
        %v321 = vshll.u32 %v223, 16
        %v323 = vrot.slane %v321, 5
        %v324 = vor.u32 %v320, %v323
        %v325 = vrot.slane %v324, 4
        %v327 = vshll.u32 %v224, 16
        %v329 = vrot.slane %v327, 5
        %v330 = vsel %vm244, %v325, %v329
        %v331 = vshrl.u32 %v224, 16
        %v333 = vrot.slane %v331, 4
        %v334 = vor.u32 %v333, %v329
        %v335 = vrot.slane %v334, 4
        %v337 = vshll.u32 %v237, 16
        %v339 = vrot.slane %v337, 5
        %v340 = vsel %vm244, %v335, %v339
        %v342 = vshrl.u32 %v225, 16
        %v344 = vrot.slane %v342, 4
        %v345 = vshll.u32 %v225, 16
        %v347 = vrot.slane %v345, 5
        %v348 = vor.u32 %v344, %v347
        %v349 = vrot.slane %v348, 4
        %v351 = vshll.u32 %v226, 16
        %v353 = vrot.slane %v351, 5
        %v354 = vsel %vm244, %v349, %v353
        %v355 = vshrl.u32 %v226, 16
        %v357 = vrot.slane %v355, 4
        %v358 = vor.u32 %v357, %v353
        %v359 = vrot.slane %v358, 4
        %v361 = vshll.u32 %v238, 16
        %v363 = vrot.slane %v361, 5
        %v364 = vsel %vm244, %v359, %v363
        %v366 = vshrl.u32 %v227, 16
        %v368 = vrot.slane %v366, 4
        %v369 = vshll.u32 %v227, 16
        %v371 = vrot.slane %v369, 5
        %v372 = vor.u32 %v368, %v371
        %v373 = vrot.slane %v372, 4
        %v375 = vshll.u32 %v228, 16
        %v377 = vrot.slane %v375, 5
        %v378 = vsel %vm244, %v373, %v377
        %v379 = vshrl.u32 %v228, 16
        %v381 = vrot.slane %v379, 4
        %v382 = vor.u32 %v381, %v377
        %v383 = vrot.slane %v382, 4
        %v385 = vshll.u32 %v239, 16
        %v387 = vrot.slane %v385, 5
        %v388 = vsel %vm244, %v383, %v387
        %v390 = vshrl.u32 %v229, 16
        %v392 = vrot.slane %v390, 4
        %v393 = vshll.u32 %v229, 16
        %v395 = vrot.slane %v393, 5
        %v396 = vor.u32 %v392, %v395
        %v397 = vrot.slane %v396, 4
        %v399 = vshll.u32 %v230, 16
        %v401 = vrot.slane %v399, 5
        %v402 = vsel %vm244, %v397, %v401
        %v403 = vshrl.u32 %v230, 16
        %v405 = vrot.slane %v403, 4
        %v406 = vor.u32 %v405, %v401
        %v407 = vrot.slane %v406, 4
        %v409 = vshll.u32 %v240, 16
        %v411 = vrot.slane %v409, 5
        %v412 = vsel %vm244, %v407, %v411
        %v414 = vshrl.u32 %v231, 16
        %v416 = vrot.slane %v414, 4
        %v417 = vshll.u32 %v231, 16
        %v419 = vrot.slane %v417, 5
        %v420 = vor.u32 %v416, %v419
        %v421 = vrot.slane %v420, 4
        %v423 = vshll.u32 %v232, 16
        %v425 = vrot.slane %v423, 5
        %v426 = vsel %vm244, %v421, %v425
        %v427 = vshrl.u32 %v232, 16
        %v429 = vrot.slane %v427, 4
        %v430 = vor.u32 %v429, %v425
        %v431 = vrot.slane %v430, 4
        %v433 = vshll.u32 %v241, 16
        %v435 = vrot.slane %v433, 5
        %v436 = vsel %vm244, %v431, %v435
        %s437 = scalar_lea.vmem [#allocation5], 4
        %v438 = vld [vmem:[%s437] sm:$0xf]
        %v439 = vunpack.c.l.b16 %v258
        %v440 = vunpack.c.l.b16 %v268
        %v441 = vunpack.c.l.b16 %v282
        %v442 = vunpack.c.l.b16 %v292
        %v443 = vunpack.c.l.b16 %v306
        %v444 = vunpack.c.l.b16 %v316
        %v445 = vunpack.c.l.b16 %v330
        %v446 = vunpack.c.l.b16 %v340
        %v447 = vunpack.c.l.b16 %v354
        %v448 = vunpack.c.l.b16 %v364
        %v449 = vunpack.c.l.b16 %v378
        %v450 = vunpack.c.l.b16 %v388
        %v451 = vunpack.c.l.b16 %v402
        %v452 = vunpack.c.l.b16 %v412
        %v453 = vunpack.c.l.b16 %v426
        %v454 = vunpack.c.l.b16 %v436
        %v455 = vpack.c.b16 %v440, %v439
        %v456 = vpack.c.b16 %v442, %v441
        %v457 = vpack.c.b16 %v444, %v443
        %v458 = vpack.c.b16 %v446, %v445
        %v459 = vpack.c.b16 %v448, %v447
        %v460 = vpack.c.b16 %v450, %v449
        %v461 = vpack.c.b16 %v452, %v451
        %v462 = vpack.c.b16 %v454, %v453
        %vm463 = vcmask 64512
        %v465 = vsel %vm463, %v455, 0
        %v468 = vsel %vm463, %v456, 0
        %v471 = vsel %vm463, %v457, 0
        %v474 = vsel %vm463, %v458, 0
        %v477 = vsel %vm463, %v459, 0
        %v480 = vsel %vm463, %v460, 0
        %v483 = vsel %vm463, %v461, 0
        %v486 = vsel %vm463, %v462, 0
        %vm488 = vcmask 1043456
        %v490 = vsel %vm488, %v438, 0
        %492 = vmatprep.subr.bf16.mxu0 0
        %493 = vmatpush1.bf16.msra.mxu0 %v490
        %494 = vmatprep.subr.bf16.mxu0 0
        %495 = vmatpush1.bf16.msra.mxu0 0
        %496 = vmatprep.subr.bf16.mxu0 0
        %497 = vmatpush1.bf16.msra.mxu0 0
        %498 = vmatprep.subr.bf16.mxu0 0
        %499 = vmatpush1.bf16.msra.mxu0 0
        %500 = vmatprep.subr.bf16.mxu0 0
        %501 = vmatpush1.bf16.msra.mxu0 0
        %502 = vmatprep.subr.bf16.mxu0 0
        %503 = vmatpush1.bf16.msra.mxu0 0
        %504 = vmatprep.subr.bf16.mxu0 0
        %505 = vmatpush1.bf16.msra.mxu0 0
        %506 = vmatprep.subr.bf16.mxu0 0
        %507 = vmatpush1.bf16.msra.mxu0 0
        %508 = vmatprep.subr.bf16.mxu0 0
        %509 = vmatpush1.bf16.msra.mxu0 0
        %510 = vmatprep.subr.bf16.mxu0 0
        %511 = vmatpush1.bf16.msra.mxu0 0
        %512 = vmatprep.subr.bf16.mxu0 0
        %513 = vmatpush1.bf16.msra.mxu0 0
        %514 = vmatprep.subr.bf16.mxu0 0
        %515 = vmatpush1.bf16.msra.mxu0 0
        %516 = vmatprep.subr.bf16.mxu0 0
        %517 = vmatpush1.bf16.msra.mxu0 0
        %518 = vmatprep.subr.bf16.mxu0 0
        %519 = vmatpush1.bf16.msra.mxu0 0
        %520 = vmatprep.subr.bf16.mxu0 0
        %521 = vmatpush1.bf16.msra.mxu0 0
        %522 = vmatprep.subr.bf16.mxu0 0
        %523 = vmatpush1.bf16.msra.mxu0 0
        %524 = vmatprep.mubr.bf16.mxu0 0
        %525 = vmatmul.mubr.bf16.gmra.mrb[0].mxu0 %v465
        %v526 = vpop.f32.mrb[0].mxu0
        %v527 = vadd.f32 0.0, %v526
        %v528 = vpop.f32.mrb[0].mxu0
        %v529 = vpop.f32.mrb[0].mxu0
        %v530 = vadd.f32 0.0, %v529
        %v531 = vpop.f32.mrb[0].mxu0
        %532 = vmatprep.mubr.bf16.mxu0 0
        %533 = vmatmul.mubr.bf16.gmra.mrb[0].mxu0 %v468
        %v534 = vpop.f32.mrb[0].mxu0
        %v535 = vadd.f32 0.0, %v534
        %v536 = vpop.f32.mrb[0].mxu0
        %v537 = vpop.f32.mrb[0].mxu0
        %v538 = vadd.f32 0.0, %v537
        %v539 = vpop.f32.mrb[0].mxu0
        %540 = vmatprep.mubr.bf16.mxu0 0
        %541 = vmatmul.mubr.bf16.gmra.mrb[0].mxu0 %v471
        %v542 = vpop.f32.mrb[0].mxu0
        %v543 = vadd.f32 0.0, %v542
        %v544 = vpop.f32.mrb[0].mxu0
        %v545 = vpop.f32.mrb[0].mxu0
        %v546 = vadd.f32 0.0, %v545
        %v547 = vpop.f32.mrb[0].mxu0
        %548 = vmatprep.mubr.bf16.mxu0 0
        %549 = vmatmul.mubr.bf16.gmra.mrb[0].mxu0 %v474
        %v550 = vpop.f32.mrb[0].mxu0
        %v551 = vadd.f32 0.0, %v550
        %v552 = vpop.f32.mrb[0].mxu0
        %v553 = vpop.f32.mrb[0].mxu0
        %v554 = vadd.f32 0.0, %v553
        %v555 = vpop.f32.mrb[0].mxu0
        %556 = vmatprep.mubr.bf16.mxu0 0
        %557 = vmatmul.mubr.bf16.gmra.mrb[0].mxu0 %v477
        %v558 = vpop.f32.mrb[0].mxu0
        %v559 = vadd.f32 0.0, %v558
        %v560 = vpop.f32.mrb[0].mxu0
        %v561 = vpop.f32.mrb[0].mxu0
        %v562 = vadd.f32 0.0, %v561
        %v563 = vpop.f32.mrb[0].mxu0
        %564 = vmatprep.mubr.bf16.mxu0 0
        %565 = vmatmul.mubr.bf16.gmra.mrb[0].mxu0 %v480
        %v566 = vpop.f32.mrb[0].mxu0
        %v567 = vadd.f32 0.0, %v566
        %v568 = vpop.f32.mrb[0].mxu0
        %v569 = vpop.f32.mrb[0].mxu0
        %v570 = vadd.f32 0.0, %v569
        %v571 = vpop.f32.mrb[0].mxu0
        %572 = vmatprep.mubr.bf16.mxu0 0
        %573 = vmatmul.mubr.bf16.gmra.mrb[0].mxu0 %v483
        %v574 = vpop.f32.mrb[0].mxu0
        %v575 = vadd.f32 0.0, %v574
        %v576 = vpop.f32.mrb[0].mxu0
        %v577 = vpop.f32.mrb[0].mxu0
        %v578 = vadd.f32 0.0, %v577
        %v579 = vpop.f32.mrb[0].mxu0
        %580 = vmatprep.mubr.bf16.mxu0 0
        %581 = vmatmul.mubr.bf16.gmra.mrb[0].mxu0 %v486
        %v582 = vpop.f32.mrb[0].mxu0
        %v583 = vadd.f32 0.0, %v582
        %v584 = vpop.f32.mrb[0].mxu0
        %v585 = vpop.f32.mrb[0].mxu0
        %v586 = vadd.f32 0.0, %v585
        %v587 = vpop.f32.mrb[0].mxu0
        %588 = vdwg.mxu0
        %v605 = vunpack.c.l.b16 %v217
        %v606 = vunpack.c.l.b16 %v218
        %v607 = vunpack.c.l.b16 %v219
        %v608 = vunpack.c.l.b16 %v220
        %v609 = vunpack.c.l.b16 %v221
        %v610 = vunpack.c.l.b16 %v222
        %v611 = vunpack.c.l.b16 %v223
        %v612 = vunpack.c.l.b16 %v224
        %v613 = vunpack.c.l.b16 %v225
        %v614 = vunpack.c.l.b16 %v226
        %v615 = vunpack.c.l.b16 %v227
        %v616 = vunpack.c.l.b16 %v228
        %v617 = vunpack.c.l.b16 %v229
        %v618 = vunpack.c.l.b16 %v230
        %v619 = vunpack.c.l.b16 %v231
        %v620 = vunpack.c.l.b16 %v232
        %v621 = vpack.c.b16 %v606, %v605
        %v622 = vpack.c.b16 %v608, %v607
        %v623 = vpack.c.b16 %v610, %v609
        %v624 = vpack.c.b16 %v612, %v611
        %v625 = vpack.c.b16 %v614, %v613
        %v626 = vpack.c.b16 %v616, %v615
        %v627 = vpack.c.b16 %v618, %v617
        %v628 = vpack.c.b16 %v620, %v619
        %v630 = vsel %vm463, %v621, 0
        %v633 = vsel %vm463, %v622, 0
        %v636 = vsel %vm463, %v623, 0
        %v639 = vsel %vm463, %v624, 0
        %v642 = vsel %vm463, %v625, 0
        %v645 = vsel %vm463, %v626, 0
        %v648 = vsel %vm463, %v627, 0
        %v651 = vsel %vm463, %v628, 0
        %v654 = vsel %vm488, %v233, 0
        %656 = vmatprep.subr.bf16.mxu0 0
        %657 = vmatpush1.bf16.msra.mxu0 %v654
        %658 = vmatprep.subr.bf16.mxu0 0
        %659 = vmatpush1.bf16.msra.mxu0 0
        %660 = vmatprep.subr.bf16.mxu0 0
        %661 = vmatpush1.bf16.msra.mxu0 0
        %662 = vmatprep.subr.bf16.mxu0 0
        %663 = vmatpush1.bf16.msra.mxu0 0
        %664 = vmatprep.subr.bf16.mxu0 0
        %665 = vmatpush1.bf16.msra.mxu0 0
        %666 = vmatprep.subr.bf16.mxu0 0
        %667 = vmatpush1.bf16.msra.mxu0 0
        %668 = vmatprep.subr.bf16.mxu0 0
        %669 = vmatpush1.bf16.msra.mxu0 0
        %670 = vmatprep.subr.bf16.mxu0 0
        %671 = vmatpush1.bf16.msra.mxu0 0
        %672 = vmatprep.subr.bf16.mxu0 0
        %673 = vmatpush1.bf16.msra.mxu0 0
        %674 = vmatprep.subr.bf16.mxu0 0
        %675 = vmatpush1.bf16.msra.mxu0 0
        %676 = vmatprep.subr.bf16.mxu0 0
        %677 = vmatpush1.bf16.msra.mxu0 0
        %678 = vmatprep.subr.bf16.mxu0 0
        %679 = vmatpush1.bf16.msra.mxu0 0
        %680 = vmatprep.subr.bf16.mxu0 0
        %681 = vmatpush1.bf16.msra.mxu0 0
        %682 = vmatprep.subr.bf16.mxu0 0
        %683 = vmatpush1.bf16.msra.mxu0 0
        %684 = vmatprep.subr.bf16.mxu0 0
        %685 = vmatpush1.bf16.msra.mxu0 0
        %686 = vmatprep.subr.bf16.mxu0 0
        %687 = vmatpush1.bf16.msra.mxu0 0
        %688 = vmatprep.mubr.bf16.mxu0 0
        %689 = vmatmul.mubr.bf16.gmra.mrb[0].mxu0 %v630
        %v690 = vpop.f32.mrb[0].mxu0
        %v691 = vadd.f32 %v527, %v690
        %v692 = vpop.f32.mrb[0].mxu0
        %v693 = vpop.f32.mrb[0].mxu0
        %v694 = vadd.f32 %v530, %v693
        %v695 = vpop.f32.mrb[0].mxu0
        %696 = vmatprep.mubr.bf16.mxu0 0
        %697 = vmatmul.mubr.bf16.gmra.mrb[0].mxu0 %v633
        %v698 = vpop.f32.mrb[0].mxu0
        %v699 = vadd.f32 %v535, %v698
        %v700 = vpop.f32.mrb[0].mxu0
        %v701 = vpop.f32.mrb[0].mxu0
        %v702 = vadd.f32 %v538, %v701
        %v703 = vpop.f32.mrb[0].mxu0
        %704 = vmatprep.mubr.bf16.mxu0 0
        %705 = vmatmul.mubr.bf16.gmra.mrb[0].mxu0 %v636
        %v706 = vpop.f32.mrb[0].mxu0
        %v707 = vadd.f32 %v543, %v706
        %v708 = vpop.f32.mrb[0].mxu0
        %v709 = vpop.f32.mrb[0].mxu0
        %v710 = vadd.f32 %v546, %v709
        %v711 = vpop.f32.mrb[0].mxu0
        %712 = vmatprep.mubr.bf16.mxu0 0
        %713 = vmatmul.mubr.bf16.gmra.mrb[0].mxu0 %v639
        %v714 = vpop.f32.mrb[0].mxu0
        %v715 = vadd.f32 %v551, %v714
        %v716 = vpop.f32.mrb[0].mxu0
        %v717 = vpop.f32.mrb[0].mxu0
        %v718 = vadd.f32 %v554, %v717
        %v719 = vpop.f32.mrb[0].mxu0
        %720 = vmatprep.mubr.bf16.mxu0 0
        %721 = vmatmul.mubr.bf16.gmra.mrb[0].mxu0 %v642
        %v722 = vpop.f32.mrb[0].mxu0
        %v723 = vadd.f32 %v559, %v722
        %v724 = vpop.f32.mrb[0].mxu0
        %v725 = vpop.f32.mrb[0].mxu0
        %v726 = vadd.f32 %v562, %v725
        %v727 = vpop.f32.mrb[0].mxu0
        %728 = vmatprep.mubr.bf16.mxu0 0
        %729 = vmatmul.mubr.bf16.gmra.mrb[0].mxu0 %v645
        %v730 = vpop.f32.mrb[0].mxu0
        %v731 = vadd.f32 %v567, %v730
        %v732 = vpop.f32.mrb[0].mxu0
        %v733 = vpop.f32.mrb[0].mxu0
        %v734 = vadd.f32 %v570, %v733
        %v735 = vpop.f32.mrb[0].mxu0
        %736 = vmatprep.mubr.bf16.mxu0 0
        %737 = vmatmul.mubr.bf16.gmra.mrb[0].mxu0 %v648
        %v738 = vpop.f32.mrb[0].mxu0
        %v739 = vadd.f32 %v575, %v738
        %v740 = vpop.f32.mrb[0].mxu0
        %v741 = vpop.f32.mrb[0].mxu0
        %v742 = vadd.f32 %v578, %v741
        %v743 = vpop.f32.mrb[0].mxu0
        %744 = vmatprep.mubr.bf16.mxu0 0
        %745 = vmatmul.mubr.bf16.gmra.mrb[0].mxu0 %v651
        %v746 = vpop.f32.mrb[0].mxu0
        %v747 = vadd.f32 %v583, %v746
        %v748 = vpop.f32.mrb[0].mxu0
        %v749 = vpop.f32.mrb[0].mxu0
        %v750 = vadd.f32 %v586, %v749
        %v751 = vpop.f32.mrb[0].mxu0
        %752 = vdwg.mxu0
        %s753 = scalar_lea.vmem %s185, 108 [#allocation2]
        %v754 = vld [vmem:[%s753] sm:$0xf]
        %v755 = vld [vmem:[%s753 + $0x4] sm:$0xf]
        %v756 = vld [vmem:[%s753 + $0xc] sm:$0xf]
        %v757 = vld [vmem:[%s753 + $0x10] sm:$0xf]
        %v758 = vld [vmem:[%s753 + $0x18] sm:$0xf]
        %v759 = vld [vmem:[%s753 + $0x1c] sm:$0xf]
        %v760 = vld [vmem:[%s753 + $0x24] sm:$0xf]
        %v761 = vld [vmem:[%s753 + $0x28] sm:$0xf]
        %v762 = vld [vmem:[%s753 + $0x30] sm:$0xf]
        %v763 = vld [vmem:[%s753 + $0x34] sm:$0xf]
        %v764 = vld [vmem:[%s753 + $0x3c] sm:$0xf]
        %v765 = vld [vmem:[%s753 + $0x40] sm:$0xf]
        %v766 = vld [vmem:[%s753 + $0x48] sm:$0xf]
        %v767 = vld [vmem:[%s753 + $0x4c] sm:$0xf]
        %v768 = vld [vmem:[%s753 + $0x54] sm:$0xf]
        %v769 = vld [vmem:[%s753 + $0x58] sm:$0xf]
        %s770 = scalar_lea.vmem [#allocation5], 8
        %v771 = vld [vmem:[%s770] sm:$0xf]
        %v788 = vunpack.c.l.b16 %v754
        %v789 = vunpack.c.l.b16 %v755
        %v790 = vunpack.c.l.b16 %v756
        %v791 = vunpack.c.l.b16 %v757
        %v792 = vunpack.c.l.b16 %v758
        %v793 = vunpack.c.l.b16 %v759
        %v794 = vunpack.c.l.b16 %v760
        %v795 = vunpack.c.l.b16 %v761
        %v796 = vunpack.c.l.b16 %v762
        %v797 = vunpack.c.l.b16 %v763
        %v798 = vunpack.c.l.b16 %v764
        %v799 = vunpack.c.l.b16 %v765
        %v800 = vunpack.c.l.b16 %v766
        %v801 = vunpack.c.l.b16 %v767
        %v802 = vunpack.c.l.b16 %v768
        %v803 = vunpack.c.l.b16 %v769
        %v804 = vpack.c.b16 %v789, %v788
        %v805 = vpack.c.b16 %v791, %v790
        %v806 = vpack.c.b16 %v793, %v792
        %v807 = vpack.c.b16 %v795, %v794
        %v808 = vpack.c.b16 %v797, %v796
        %v809 = vpack.c.b16 %v799, %v798
        %v810 = vpack.c.b16 %v801, %v800
        %v811 = vpack.c.b16 %v803, %v802
        %v813 = vsel %vm463, %v804, 0
        %v816 = vsel %vm463, %v805, 0
        %v819 = vsel %vm463, %v806, 0
        %v822 = vsel %vm463, %v807, 0
        %v825 = vsel %vm463, %v808, 0
        %v828 = vsel %vm463, %v809, 0
        %v831 = vsel %vm463, %v810, 0
        %v834 = vsel %vm463, %v811, 0
        %v837 = vsel %vm488, %v771, 0
        %839 = vmatprep.subr.bf16.mxu0 0
        %840 = vmatpush1.bf16.msra.mxu0 %v837
        %841 = vmatprep.subr.bf16.mxu0 0
        %842 = vmatpush1.bf16.msra.mxu0 0
        %843 = vmatprep.subr.bf16.mxu0 0
        %844 = vmatpush1.bf16.msra.mxu0 0
        %845 = vmatprep.subr.bf16.mxu0 0
        %846 = vmatpush1.bf16.msra.mxu0 0
        %847 = vmatprep.subr.bf16.mxu0 0
        %848 = vmatpush1.bf16.msra.mxu0 0
        %849 = vmatprep.subr.bf16.mxu0 0
        %850 = vmatpush1.bf16.msra.mxu0 0
        %851 = vmatprep.subr.bf16.mxu0 0
        %852 = vmatpush1.bf16.msra.mxu0 0
        %853 = vmatprep.subr.bf16.mxu0 0
        %854 = vmatpush1.bf16.msra.mxu0 0
        %855 = vmatprep.subr.bf16.mxu0 0
        %856 = vmatpush1.bf16.msra.mxu0 0
        %857 = vmatprep.subr.bf16.mxu0 0
        %858 = vmatpush1.bf16.msra.mxu0 0
        %859 = vmatprep.subr.bf16.mxu0 0
        %860 = vmatpush1.bf16.msra.mxu0 0
        %861 = vmatprep.subr.bf16.mxu0 0
        %862 = vmatpush1.bf16.msra.mxu0 0
        %863 = vmatprep.subr.bf16.mxu0 0
        %864 = vmatpush1.bf16.msra.mxu0 0
        %865 = vmatprep.subr.bf16.mxu0 0
        %866 = vmatpush1.bf16.msra.mxu0 0
        %867 = vmatprep.subr.bf16.mxu0 0
        %868 = vmatpush1.bf16.msra.mxu0 0
        %869 = vmatprep.subr.bf16.mxu0 0
        %870 = vmatpush1.bf16.msra.mxu0 0
        %871 = vmatprep.mubr.bf16.mxu0 0
        %872 = vmatmul.mubr.bf16.gmra.mrb[0].mxu0 %v813
        %v873 = vpop.f32.mrb[0].mxu0
        %v874 = vadd.f32 0.0, %v873
        %v875 = vpop.f32.mrb[0].mxu0
        %v876 = vpop.f32.mrb[0].mxu0
        %v877 = vadd.f32 0.0, %v876
        %v878 = vpop.f32.mrb[0].mxu0
        %879 = vmatprep.mubr.bf16.mxu0 0
        %880 = vmatmul.mubr.bf16.gmra.mrb[0].mxu0 %v816
        %v881 = vpop.f32.mrb[0].mxu0
        %v882 = vadd.f32 0.0, %v881
        %v883 = vpop.f32.mrb[0].mxu0
        %v884 = vpop.f32.mrb[0].mxu0
        %v885 = vadd.f32 0.0, %v884
        %v886 = vpop.f32.mrb[0].mxu0
        %887 = vmatprep.mubr.bf16.mxu0 0
        %888 = vmatmul.mubr.bf16.gmra.mrb[0].mxu0 %v819
        %v889 = vpop.f32.mrb[0].mxu0
        %v890 = vadd.f32 0.0, %v889
        %v891 = vpop.f32.mrb[0].mxu0
        %v892 = vpop.f32.mrb[0].mxu0
        %v893 = vadd.f32 0.0, %v892
        %v894 = vpop.f32.mrb[0].mxu0
        %895 = vmatprep.mubr.bf16.mxu0 0
        %896 = vmatmul.mubr.bf16.gmra.mrb[0].mxu0 %v822
        %v897 = vpop.f32.mrb[0].mxu0
        %v898 = vadd.f32 0.0, %v897
        %v899 = vpop.f32.mrb[0].mxu0
        %v900 = vpop.f32.mrb[0].mxu0
        %v901 = vadd.f32 0.0, %v900
        %v902 = vpop.f32.mrb[0].mxu0
        %903 = vmatprep.mubr.bf16.mxu0 0
        %904 = vmatmul.mubr.bf16.gmra.mrb[0].mxu0 %v825
        %v905 = vpop.f32.mrb[0].mxu0
        %v906 = vadd.f32 0.0, %v905
        %v907 = vpop.f32.mrb[0].mxu0
        %v908 = vpop.f32.mrb[0].mxu0
        %v909 = vadd.f32 0.0, %v908
        %v910 = vpop.f32.mrb[0].mxu0
        %911 = vmatprep.mubr.bf16.mxu0 0
        %912 = vmatmul.mubr.bf16.gmra.mrb[0].mxu0 %v828
        %v913 = vpop.f32.mrb[0].mxu0
        %v914 = vadd.f32 0.0, %v913
        %v915 = vpop.f32.mrb[0].mxu0
        %v916 = vpop.f32.mrb[0].mxu0
        %v917 = vadd.f32 0.0, %v916
        %v918 = vpop.f32.mrb[0].mxu0
        %919 = vmatprep.mubr.bf16.mxu0 0
        %920 = vmatmul.mubr.bf16.gmra.mrb[0].mxu0 %v831
        %v921 = vpop.f32.mrb[0].mxu0
        %v922 = vadd.f32 0.0, %v921
        %v923 = vpop.f32.mrb[0].mxu0
        %v924 = vpop.f32.mrb[0].mxu0
        %v925 = vadd.f32 0.0, %v924
        %v926 = vpop.f32.mrb[0].mxu0
        %927 = vmatprep.mubr.bf16.mxu0 0
        %928 = vmatmul.mubr.bf16.gmra.mrb[0].mxu0 %v834
        %v929 = vpop.f32.mrb[0].mxu0
        %v930 = vadd.f32 0.0, %v929
        %v931 = vpop.f32.mrb[0].mxu0
        %v932 = vpop.f32.mrb[0].mxu0
        %v933 = vadd.f32 0.0, %v932
        %v934 = vpop.f32.mrb[0].mxu0
        %935 = vdwg.mxu0
        %v936 = vadd.f32 %v691, %v874
        %v937 = vadd.f32 %v694, %v877
        %v938 = vadd.f32 %v699, %v882
        %v939 = vadd.f32 %v702, %v885
        %v940 = vadd.f32 %v707, %v890
        %v941 = vadd.f32 %v710, %v893
        %v942 = vadd.f32 %v715, %v898
        %v943 = vadd.f32 %v718, %v901
        %v944 = vadd.f32 %v723, %v906
        %v945 = vadd.f32 %v726, %v909
        %v946 = vadd.f32 %v731, %v914
        %v947 = vadd.f32 %v734, %v917
        %v948 = vadd.f32 %v739, %v922
        %v949 = vadd.f32 %v742, %v925
        %v950 = vadd.f32 %v747, %v930
        %v951 = vadd.f32 %v750, %v933
        %v952 = vld [vmem:[%s753] sm:$0xf]
        %v953 = vld [vmem:[%s753 + $0x4] sm:$0xf]
        %v954 = vld [vmem:[%s753 + $0x8] sm:$0x1]
        %v955 = vld [vmem:[%s753 + $0xc] sm:$0xf]
        %v956 = vld [vmem:[%s753 + $0x10] sm:$0xf]
        %v957 = vld [vmem:[%s753 + $0x14] sm:$0x1]
        %v958 = vld [vmem:[%s753 + $0x18] sm:$0xf]
        %v959 = vld [vmem:[%s753 + $0x1c] sm:$0xf]
        %v960 = vld [vmem:[%s753 + $0x20] sm:$0x1]
        %v961 = vld [vmem:[%s753 + $0x24] sm:$0xf]
        %v962 = vld [vmem:[%s753 + $0x28] sm:$0xf]
        %v963 = vld [vmem:[%s753 + $0x2c] sm:$0x1]
        %v964 = vld [vmem:[%s753 + $0x30] sm:$0xf]
        %v965 = vld [vmem:[%s753 + $0x34] sm:$0xf]
        %v966 = vld [vmem:[%s753 + $0x38] sm:$0x1]
        %v967 = vld [vmem:[%s753 + $0x3c] sm:$0xf]
        %v968 = vld [vmem:[%s753 + $0x40] sm:$0xf]
        %v969 = vld [vmem:[%s753 + $0x44] sm:$0x1]
        %v970 = vld [vmem:[%s753 + $0x48] sm:$0xf]
        %v971 = vld [vmem:[%s753 + $0x4c] sm:$0xf]
        %v972 = vld [vmem:[%s753 + $0x50] sm:$0x1]
        %v973 = vld [vmem:[%s753 + $0x54] sm:$0xf]
        %v974 = vld [vmem:[%s753 + $0x58] sm:$0xf]
        %v975 = vld [vmem:[%s753 + $0x5c] sm:$0x1]
        %v977 = vshrl.u32 %v952, 16
        %v979 = vrot.slane %v977, 4
        %v980 = vshll.u32 %v952, 16
        %v982 = vrot.slane %v980, 5
        %v983 = vor.u32 %v979, %v982
        %v984 = vrot.slane %v983, 4
        %v986 = vshll.u32 %v953, 16
        %v988 = vrot.slane %v986, 5
        %v989 = vsel %vm244, %v984, %v988
        %v990 = vshrl.u32 %v953, 16
        %v992 = vrot.slane %v990, 4
        %v993 = vor.u32 %v992, %v988
        %v994 = vrot.slane %v993, 4
        %v996 = vshll.u32 %v954, 16
        %v998 = vrot.slane %v996, 5
        %v999 = vsel %vm244, %v994, %v998
        %v1001 = vshrl.u32 %v955, 16
        %v1003 = vrot.slane %v1001, 4
        %v1004 = vshll.u32 %v955, 16
        %v1006 = vrot.slane %v1004, 5
        %v1007 = vor.u32 %v1003, %v1006
        %v1008 = vrot.slane %v1007, 4
        %v1010 = vshll.u32 %v956, 16
        %v1012 = vrot.slane %v1010, 5
        %v1013 = vsel %vm244, %v1008, %v1012
        %v1014 = vshrl.u32 %v956, 16
        %v1016 = vrot.slane %v1014, 4
        %v1017 = vor.u32 %v1016, %v1012
        %v1018 = vrot.slane %v1017, 4
        %v1020 = vshll.u32 %v957, 16
        %v1022 = vrot.slane %v1020, 5
        %v1023 = vsel %vm244, %v1018, %v1022
        %v1025 = vshrl.u32 %v958, 16
        %v1027 = vrot.slane %v1025, 4
        %v1028 = vshll.u32 %v958, 16
        %v1030 = vrot.slane %v1028, 5
        %v1031 = vor.u32 %v1027, %v1030
        %v1032 = vrot.slane %v1031, 4
        %v1034 = vshll.u32 %v959, 16
        %v1036 = vrot.slane %v1034, 5
        %v1037 = vsel %vm244, %v1032, %v1036
        %v1038 = vshrl.u32 %v959, 16
        %v1040 = vrot.slane %v1038, 4
        %v1041 = vor.u32 %v1040, %v1036
        %v1042 = vrot.slane %v1041, 4
        %v1044 = vshll.u32 %v960, 16
        %v1046 = vrot.slane %v1044, 5
        %v1047 = vsel %vm244, %v1042, %v1046
        %v1049 = vshrl.u32 %v961, 16
        %v1051 = vrot.slane %v1049, 4
        %v1052 = vshll.u32 %v961, 16
        %v1054 = vrot.slane %v1052, 5
        %v1055 = vor.u32 %v1051, %v1054
        %v1056 = vrot.slane %v1055, 4
        %v1058 = vshll.u32 %v962, 16
        %v1060 = vrot.slane %v1058, 5
        %v1061 = vsel %vm244, %v1056, %v1060
        %v1062 = vshrl.u32 %v962, 16
        %v1064 = vrot.slane %v1062, 4
        %v1065 = vor.u32 %v1064, %v1060
        %v1066 = vrot.slane %v1065, 4
        %v1068 = vshll.u32 %v963, 16
        %v1070 = vrot.slane %v1068, 5
        %v1071 = vsel %vm244, %v1066, %v1070
        %v1073 = vshrl.u32 %v964, 16
        %v1075 = vrot.slane %v1073, 4
        %v1076 = vshll.u32 %v964, 16
        %v1078 = vrot.slane %v1076, 5
        %v1079 = vor.u32 %v1075, %v1078
        %v1080 = vrot.slane %v1079, 4
        %v1082 = vshll.u32 %v965, 16
        %v1084 = vrot.slane %v1082, 5
        %v1085 = vsel %vm244, %v1080, %v1084
        %v1086 = vshrl.u32 %v965, 16
        %v1088 = vrot.slane %v1086, 4
        %v1089 = vor.u32 %v1088, %v1084
        %v1090 = vrot.slane %v1089, 4
        %v1092 = vshll.u32 %v966, 16
        %v1094 = vrot.slane %v1092, 5
        %v1095 = vsel %vm244, %v1090, %v1094
        %v1097 = vshrl.u32 %v967, 16
        %v1099 = vrot.slane %v1097, 4
        %v1100 = vshll.u32 %v967, 16
        %v1102 = vrot.slane %v1100, 5
        %v1103 = vor.u32 %v1099, %v1102
        %v1104 = vrot.slane %v1103, 4
        %v1106 = vshll.u32 %v968, 16
        %v1108 = vrot.slane %v1106, 5
        %v1109 = vsel %vm244, %v1104, %v1108
        %v1110 = vshrl.u32 %v968, 16
        %v1112 = vrot.slane %v1110, 4
        %v1113 = vor.u32 %v1112, %v1108
        %v1114 = vrot.slane %v1113, 4
        %v1116 = vshll.u32 %v969, 16
        %v1118 = vrot.slane %v1116, 5
        %v1119 = vsel %vm244, %v1114, %v1118
        %v1121 = vshrl.u32 %v970, 16
        %v1123 = vrot.slane %v1121, 4
        %v1124 = vshll.u32 %v970, 16
        %v1126 = vrot.slane %v1124, 5
        %v1127 = vor.u32 %v1123, %v1126
        %v1128 = vrot.slane %v1127, 4
        %v1130 = vshll.u32 %v971, 16
        %v1132 = vrot.slane %v1130, 5
        %v1133 = vsel %vm244, %v1128, %v1132
        %v1134 = vshrl.u32 %v971, 16
        %v1136 = vrot.slane %v1134, 4
        %v1137 = vor.u32 %v1136, %v1132
        %v1138 = vrot.slane %v1137, 4
        %v1140 = vshll.u32 %v972, 16
        %v1142 = vrot.slane %v1140, 5
        %v1143 = vsel %vm244, %v1138, %v1142
        %v1145 = vshrl.u32 %v973, 16
        %v1147 = vrot.slane %v1145, 4
        %v1148 = vshll.u32 %v973, 16
        %v1150 = vrot.slane %v1148, 5
        %v1151 = vor.u32 %v1147, %v1150
        %v1152 = vrot.slane %v1151, 4
        %v1154 = vshll.u32 %v974, 16
        %v1156 = vrot.slane %v1154, 5
        %v1157 = vsel %vm244, %v1152, %v1156
        %v1158 = vshrl.u32 %v974, 16
        %v1160 = vrot.slane %v1158, 4
        %v1161 = vor.u32 %v1160, %v1156
        %v1162 = vrot.slane %v1161, 4
        %v1164 = vshll.u32 %v975, 16
        %v1166 = vrot.slane %v1164, 5
        %v1167 = vsel %vm244, %v1162, %v1166
        %s1168 = scalar_lea.vmem [#allocation5], 12
        %v1169 = vld [vmem:[%s1168] sm:$0xf]
        %v1170 = vunpack.c.l.b16 %v989
        %v1171 = vunpack.c.l.b16 %v999
        %v1172 = vunpack.c.l.b16 %v1013
        %v1173 = vunpack.c.l.b16 %v1023
        %v1174 = vunpack.c.l.b16 %v1037
        %v1175 = vunpack.c.l.b16 %v1047
        %v1176 = vunpack.c.l.b16 %v1061
        %v1177 = vunpack.c.l.b16 %v1071
        %v1178 = vunpack.c.l.b16 %v1085
        %v1179 = vunpack.c.l.b16 %v1095
        %v1180 = vunpack.c.l.b16 %v1109
        %v1181 = vunpack.c.l.b16 %v1119
        %v1182 = vunpack.c.l.b16 %v1133
        %v1183 = vunpack.c.l.b16 %v1143
        %v1184 = vunpack.c.l.b16 %v1157
        %v1185 = vunpack.c.l.b16 %v1167
        %v1186 = vpack.c.b16 %v1171, %v1170
        %v1187 = vpack.c.b16 %v1173, %v1172
        %v1188 = vpack.c.b16 %v1175, %v1174
        %v1189 = vpack.c.b16 %v1177, %v1176
        %v1190 = vpack.c.b16 %v1179, %v1178
        %v1191 = vpack.c.b16 %v1181, %v1180
        %v1192 = vpack.c.b16 %v1183, %v1182
        %v1193 = vpack.c.b16 %v1185, %v1184
        %v1195 = vsel %vm463, %v1186, 0
        %v1198 = vsel %vm463, %v1187, 0
        %v1201 = vsel %vm463, %v1188, 0
        %v1204 = vsel %vm463, %v1189, 0
        %v1207 = vsel %vm463, %v1190, 0
        %v1210 = vsel %vm463, %v1191, 0
        %v1213 = vsel %vm463, %v1192, 0
        %v1216 = vsel %vm463, %v1193, 0
        %v1219 = vsel %vm488, %v1169, 0
        %1221 = vmatprep.subr.bf16.mxu0 0
        %1222 = vmatpush1.bf16.msra.mxu0 %v1219
        %1223 = vmatprep.subr.bf16.mxu0 0
        %1224 = vmatpush1.bf16.msra.mxu0 0
        %1225 = vmatprep.subr.bf16.mxu0 0
        %1226 = vmatpush1.bf16.msra.mxu0 0
        %1227 = vmatprep.subr.bf16.mxu0 0
        %1228 = vmatpush1.bf16.msra.mxu0 0
        %1229 = vmatprep.subr.bf16.mxu0 0
        %1230 = vmatpush1.bf16.msra.mxu0 0
        %1231 = vmatprep.subr.bf16.mxu0 0
        %1232 = vmatpush1.bf16.msra.mxu0 0
        %1233 = vmatprep.subr.bf16.mxu0 0
        %1234 = vmatpush1.bf16.msra.mxu0 0
        %1235 = vmatprep.subr.bf16.mxu0 0
        %1236 = vmatpush1.bf16.msra.mxu0 0
        %1237 = vmatprep.subr.bf16.mxu0 0
        %1238 = vmatpush1.bf16.msra.mxu0 0
        %1239 = vmatprep.subr.bf16.mxu0 0
        %1240 = vmatpush1.bf16.msra.mxu0 0
        %1241 = vmatprep.subr.bf16.mxu0 0
        %1242 = vmatpush1.bf16.msra.mxu0 0
        %1243 = vmatprep.subr.bf16.mxu0 0
        %1244 = vmatpush1.bf16.msra.mxu0 0
        %1245 = vmatprep.subr.bf16.mxu0 0
        %1246 = vmatpush1.bf16.msra.mxu0 0
        %1247 = vmatprep.subr.bf16.mxu0 0
        %1248 = vmatpush1.bf16.msra.mxu0 0
        %1249 = vmatprep.subr.bf16.mxu0 0
        %1250 = vmatpush1.bf16.msra.mxu0 0
        %1251 = vmatprep.subr.bf16.mxu0 0
        %1252 = vmatpush1.bf16.msra.mxu0 0
        %1253 = vmatprep.mubr.bf16.mxu0 0
        %1254 = vmatmul.mubr.bf16.gmra.mrb[0].mxu0 %v1195
        %v1255 = vpop.f32.mrb[0].mxu0
        %v1256 = vadd.f32 0.0, %v1255
        %v1257 = vpop.f32.mrb[0].mxu0
        %v1258 = vpop.f32.mrb[0].mxu0
        %v1259 = vadd.f32 0.0, %v1258
        %v1260 = vpop.f32.mrb[0].mxu0
        %1261 = vmatprep.mubr.bf16.mxu0 0
        %1262 = vmatmul.mubr.bf16.gmra.mrb[0].mxu0 %v1198
        %v1263 = vpop.f32.mrb[0].mxu0
        %v1264 = vadd.f32 0.0, %v1263
        %v1265 = vpop.f32.mrb[0].mxu0
        %v1266 = vpop.f32.mrb[0].mxu0
        %v1267 = vadd.f32 0.0, %v1266
        %v1268 = vpop.f32.mrb[0].mxu0
        %1269 = vmatprep.mubr.bf16.mxu0 0
        %1270 = vmatmul.mubr.bf16.gmra.mrb[0].mxu0 %v1201
        %v1271 = vpop.f32.mrb[0].mxu0
        %v1272 = vadd.f32 0.0, %v1271
        %v1273 = vpop.f32.mrb[0].mxu0
        %v1274 = vpop.f32.mrb[0].mxu0
        %v1275 = vadd.f32 0.0, %v1274
        %v1276 = vpop.f32.mrb[0].mxu0
        %1277 = vmatprep.mubr.bf16.mxu0 0
        %1278 = vmatmul.mubr.bf16.gmra.mrb[0].mxu0 %v1204
        %v1279 = vpop.f32.mrb[0].mxu0
        %v1280 = vadd.f32 0.0, %v1279
        %v1281 = vpop.f32.mrb[0].mxu0
        %v1282 = vpop.f32.mrb[0].mxu0
        %v1283 = vadd.f32 0.0, %v1282
        %v1284 = vpop.f32.mrb[0].mxu0
        %1285 = vmatprep.mubr.bf16.mxu0 0
        %1286 = vmatmul.mubr.bf16.gmra.mrb[0].mxu0 %v1207
        %v1287 = vpop.f32.mrb[0].mxu0
        %v1288 = vadd.f32 0.0, %v1287
        %v1289 = vpop.f32.mrb[0].mxu0
        %v1290 = vpop.f32.mrb[0].mxu0
        %v1291 = vadd.f32 0.0, %v1290
        %v1292 = vpop.f32.mrb[0].mxu0
        %1293 = vmatprep.mubr.bf16.mxu0 0
        %1294 = vmatmul.mubr.bf16.gmra.mrb[0].mxu0 %v1210
        %v1295 = vpop.f32.mrb[0].mxu0
        %v1296 = vadd.f32 0.0, %v1295
        %v1297 = vpop.f32.mrb[0].mxu0
        %v1298 = vpop.f32.mrb[0].mxu0
        %v1299 = vadd.f32 0.0, %v1298
        %v1300 = vpop.f32.mrb[0].mxu0
        %1301 = vmatprep.mubr.bf16.mxu0 0
        %1302 = vmatmul.mubr.bf16.gmra.mrb[0].mxu0 %v1213
        %v1303 = vpop.f32.mrb[0].mxu0
        %v1304 = vadd.f32 0.0, %v1303
        %v1305 = vpop.f32.mrb[0].mxu0
        %v1306 = vpop.f32.mrb[0].mxu0
        %v1307 = vadd.f32 0.0, %v1306
        %v1308 = vpop.f32.mrb[0].mxu0
        %1309 = vmatprep.mubr.bf16.mxu0 0
        %1310 = vmatmul.mubr.bf16.gmra.mrb[0].mxu0 %v1216
        %v1311 = vpop.f32.mrb[0].mxu0
        %v1312 = vadd.f32 0.0, %v1311
        %v1313 = vpop.f32.mrb[0].mxu0
        %v1314 = vpop.f32.mrb[0].mxu0
        %v1315 = vadd.f32 0.0, %v1314
        %v1316 = vpop.f32.mrb[0].mxu0
        %1317 = vdwg.mxu0
        %v1318 = vadd.f32 %v936, %v1256
        %v1319 = vadd.f32 %v937, %v1259
        %v1320 = vadd.f32 %v938, %v1264
        %v1321 = vadd.f32 %v939, %v1267
        %v1322 = vadd.f32 %v940, %v1272
        %v1323 = vadd.f32 %v941, %v1275
        %v1324 = vadd.f32 %v942, %v1280
        %v1325 = vadd.f32 %v943, %v1283
        %v1326 = vadd.f32 %v944, %v1288
        %v1327 = vadd.f32 %v945, %v1291
        %v1328 = vadd.f32 %v946, %v1296
        %v1329 = vadd.f32 %v947, %v1299
        %v1330 = vadd.f32 %v948, %v1304
        %v1331 = vadd.f32 %v949, %v1307
        %v1332 = vadd.f32 %v950, %v1312
        %v1333 = vadd.f32 %v951, %v1315
        %s1334 = scalar_lea.vmem %s185, 12 [#allocation2]
        %v1335 = vld [vmem:[%s1334] sm:$0xf]
        %v1336 = vld [vmem:[%s1334 + $0x4] sm:$0xf]
        %v1337 = vld [vmem:[%s1334 + $0xc] sm:$0xf]
        %v1338 = vld [vmem:[%s1334 + $0x10] sm:$0xf]
        %v1339 = vld [vmem:[%s1334 + $0x18] sm:$0xf]
        %v1340 = vld [vmem:[%s1334 + $0x1c] sm:$0xf]
        %v1341 = vld [vmem:[%s1334 + $0x24] sm:$0xf]
        %v1342 = vld [vmem:[%s1334 + $0x28] sm:$0xf]
        %v1343 = vld [vmem:[%s1334 + $0x30] sm:$0xf]
        %v1344 = vld [vmem:[%s1334 + $0x34] sm:$0xf]
        %v1345 = vld [vmem:[%s1334 + $0x3c] sm:$0xf]
        %v1346 = vld [vmem:[%s1334 + $0x40] sm:$0xf]
        %v1347 = vld [vmem:[%s1334 + $0x48] sm:$0xf]
        %v1348 = vld [vmem:[%s1334 + $0x4c] sm:$0xf]
        %v1349 = vld [vmem:[%s1334 + $0x54] sm:$0xf]
        %v1350 = vld [vmem:[%s1334 + $0x58] sm:$0xf]
        %s1351 = scalar_lea.vmem [#allocation5], 16
        %v1352 = vld [vmem:[%s1351] sm:$0xf]
        %v1369 = vunpack.c.l.b16 %v1335
        %v1370 = vunpack.c.l.b16 %v1336
        %v1371 = vunpack.c.l.b16 %v1337
        %v1372 = vunpack.c.l.b16 %v1338
        %v1373 = vunpack.c.l.b16 %v1339
        %v1374 = vunpack.c.l.b16 %v1340
        %v1375 = vunpack.c.l.b16 %v1341
        %v1376 = vunpack.c.l.b16 %v1342
        %v1377 = vunpack.c.l.b16 %v1343
        %v1378 = vunpack.c.l.b16 %v1344
        %v1379 = vunpack.c.l.b16 %v1345
        %v1380 = vunpack.c.l.b16 %v1346
        %v1381 = vunpack.c.l.b16 %v1347
        %v1382 = vunpack.c.l.b16 %v1348
        %v1383 = vunpack.c.l.b16 %v1349
        %v1384 = vunpack.c.l.b16 %v1350
        %v1385 = vpack.c.b16 %v1370, %v1369
        %v1386 = vpack.c.b16 %v1372, %v1371
        %v1387 = vpack.c.b16 %v1374, %v1373
        %v1388 = vpack.c.b16 %v1376, %v1375
        %v1389 = vpack.c.b16 %v1378, %v1377
        %v1390 = vpack.c.b16 %v1380, %v1379
        %v1391 = vpack.c.b16 %v1382, %v1381
        %v1392 = vpack.c.b16 %v1384, %v1383
        %v1394 = vsel %vm463, %v1385, 0
        %v1397 = vsel %vm463, %v1386, 0
        %v1400 = vsel %vm463, %v1387, 0
        %v1403 = vsel %vm463, %v1388, 0
        %v1406 = vsel %vm463, %v1389, 0
        %v1409 = vsel %vm463, %v1390, 0
        %v1412 = vsel %vm463, %v1391, 0
        %v1415 = vsel %vm463, %v1392, 0
        %v1418 = vsel %vm488, %v1352, 0
        %1420 = vmatprep.subr.bf16.mxu0 0
        %1421 = vmatpush1.bf16.msra.mxu0 %v1418
        %1422 = vmatprep.subr.bf16.mxu0 0
        %1423 = vmatpush1.bf16.msra.mxu0 0
        %1424 = vmatprep.subr.bf16.mxu0 0
        %1425 = vmatpush1.bf16.msra.mxu0 0
        %1426 = vmatprep.subr.bf16.mxu0 0
        %1427 = vmatpush1.bf16.msra.mxu0 0
        %1428 = vmatprep.subr.bf16.mxu0 0
        %1429 = vmatpush1.bf16.msra.mxu0 0
        %1430 = vmatprep.subr.bf16.mxu0 0
        %1431 = vmatpush1.bf16.msra.mxu0 0
        %1432 = vmatprep.subr.bf16.mxu0 0
        %1433 = vmatpush1.bf16.msra.mxu0 0
        %1434 = vmatprep.subr.bf16.mxu0 0
        %1435 = vmatpush1.bf16.msra.mxu0 0
        %1436 = vmatprep.subr.bf16.mxu0 0
        %1437 = vmatpush1.bf16.msra.mxu0 0
        %1438 = vmatprep.subr.bf16.mxu0 0
        %1439 = vmatpush1.bf16.msra.mxu0 0
        %1440 = vmatprep.subr.bf16.mxu0 0
        %1441 = vmatpush1.bf16.msra.mxu0 0
        %1442 = vmatprep.subr.bf16.mxu0 0
        %1443 = vmatpush1.bf16.msra.mxu0 0
        %1444 = vmatprep.subr.bf16.mxu0 0
        %1445 = vmatpush1.bf16.msra.mxu0 0
        %1446 = vmatprep.subr.bf16.mxu0 0
        %1447 = vmatpush1.bf16.msra.mxu0 0
        %1448 = vmatprep.subr.bf16.mxu0 0
        %1449 = vmatpush1.bf16.msra.mxu0 0
        %1450 = vmatprep.subr.bf16.mxu0 0
        %1451 = vmatpush1.bf16.msra.mxu0 0
        %1452 = vmatprep.mubr.bf16.mxu0 0
        %1453 = vmatmul.mubr.bf16.gmra.mrb[0].mxu0 %v1394
        %v1454 = vpop.f32.mrb[0].mxu0
        %v1455 = vadd.f32 0.0, %v1454
        %v1456 = vpop.f32.mrb[0].mxu0
        %v1457 = vpop.f32.mrb[0].mxu0
        %v1458 = vadd.f32 0.0, %v1457
        %v1459 = vpop.f32.mrb[0].mxu0
        %1460 = vmatprep.mubr.bf16.mxu0 0
        %1461 = vmatmul.mubr.bf16.gmra.mrb[0].mxu0 %v1397
        %v1462 = vpop.f32.mrb[0].mxu0
        %v1463 = vadd.f32 0.0, %v1462
        %v1464 = vpop.f32.mrb[0].mxu0
        %v1465 = vpop.f32.mrb[0].mxu0
        %v1466 = vadd.f32 0.0, %v1465
        %v1467 = vpop.f32.mrb[0].mxu0
        %1468 = vmatprep.mubr.bf16.mxu0 0
        %1469 = vmatmul.mubr.bf16.gmra.mrb[0].mxu0 %v1400
        %v1470 = vpop.f32.mrb[0].mxu0
        %v1471 = vadd.f32 0.0, %v1470
        %v1472 = vpop.f32.mrb[0].mxu0
        %v1473 = vpop.f32.mrb[0].mxu0
        %v1474 = vadd.f32 0.0, %v1473
        %v1475 = vpop.f32.mrb[0].mxu0
        %1476 = vmatprep.mubr.bf16.mxu0 0
        %1477 = vmatmul.mubr.bf16.gmra.mrb[0].mxu0 %v1403
        %v1478 = vpop.f32.mrb[0].mxu0
        %v1479 = vadd.f32 0.0, %v1478
        %v1480 = vpop.f32.mrb[0].mxu0
        %v1481 = vpop.f32.mrb[0].mxu0
        %v1482 = vadd.f32 0.0, %v1481
        %v1483 = vpop.f32.mrb[0].mxu0
        %1484 = vmatprep.mubr.bf16.mxu0 0
        %1485 = vmatmul.mubr.bf16.gmra.mrb[0].mxu0 %v1406
        %v1486 = vpop.f32.mrb[0].mxu0
        %v1487 = vadd.f32 0.0, %v1486
        %v1488 = vpop.f32.mrb[0].mxu0
        %v1489 = vpop.f32.mrb[0].mxu0
        %v1490 = vadd.f32 0.0, %v1489
        %v1491 = vpop.f32.mrb[0].mxu0
        %1492 = vmatprep.mubr.bf16.mxu0 0
        %1493 = vmatmul.mubr.bf16.gmra.mrb[0].mxu0 %v1409
        %v1494 = vpop.f32.mrb[0].mxu0
        %v1495 = vadd.f32 0.0, %v1494
        %v1496 = vpop.f32.mrb[0].mxu0
        %v1497 = vpop.f32.mrb[0].mxu0
        %v1498 = vadd.f32 0.0, %v1497
        %v1499 = vpop.f32.mrb[0].mxu0
        %1500 = vmatprep.mubr.bf16.mxu0 0
        %1501 = vmatmul.mubr.bf16.gmra.mrb[0].mxu0 %v1412
        %v1502 = vpop.f32.mrb[0].mxu0
        %v1503 = vadd.f32 0.0, %v1502
        %v1504 = vpop.f32.mrb[0].mxu0
        %v1505 = vpop.f32.mrb[0].mxu0
        %v1506 = vadd.f32 0.0, %v1505
        %v1507 = vpop.f32.mrb[0].mxu0
        %1508 = vmatprep.mubr.bf16.mxu0 0
        %1509 = vmatmul.mubr.bf16.gmra.mrb[0].mxu0 %v1415
        %v1510 = vpop.f32.mrb[0].mxu0
        %v1511 = vadd.f32 0.0, %v1510
        %v1512 = vpop.f32.mrb[0].mxu0
        %v1513 = vpop.f32.mrb[0].mxu0
        %v1514 = vadd.f32 0.0, %v1513
        %v1515 = vpop.f32.mrb[0].mxu0
        %1516 = vdwg.mxu0
        %v1517 = vadd.f32 %v1318, %v1455
        %v1518 = vadd.f32 %v1319, %v1458
        %v1519 = vadd.f32 %v1320, %v1463
        %v1520 = vadd.f32 %v1321, %v1466
        %v1521 = vadd.f32 %v1322, %v1471
        %v1522 = vadd.f32 %v1323, %v1474
        %v1523 = vadd.f32 %v1324, %v1479
        %v1524 = vadd.f32 %v1325, %v1482
        %v1525 = vadd.f32 %v1326, %v1487
        %v1526 = vadd.f32 %v1327, %v1490
        %v1527 = vadd.f32 %v1328, %v1495
        %v1528 = vadd.f32 %v1329, %v1498
        %v1529 = vadd.f32 %v1330, %v1503
        %v1530 = vadd.f32 %v1331, %v1506
        %v1531 = vadd.f32 %v1332, %v1511
        %v1532 = vadd.f32 %v1333, %v1514
        %v1533 = vld [vmem:[%s1334] sm:$0xf]
        %v1534 = vld [vmem:[%s1334 + $0x4] sm:$0xf]
        %v1535 = vld [vmem:[%s1334 + $0x8] sm:$0x1]
        %v1536 = vld [vmem:[%s1334 + $0xc] sm:$0xf]
        %v1537 = vld [vmem:[%s1334 + $0x10] sm:$0xf]
        %v1538 = vld [vmem:[%s1334 + $0x14] sm:$0x1]
        %v1539 = vld [vmem:[%s1334 + $0x18] sm:$0xf]
        %v1540 = vld [vmem:[%s1334 + $0x1c] sm:$0xf]
        %v1541 = vld [vmem:[%s1334 + $0x20] sm:$0x1]
        %v1542 = vld [vmem:[%s1334 + $0x24] sm:$0xf]
        %v1543 = vld [vmem:[%s1334 + $0x28] sm:$0xf]
        %v1544 = vld [vmem:[%s1334 + $0x2c] sm:$0x1]
        %v1545 = vld [vmem:[%s1334 + $0x30] sm:$0xf]
        %v1546 = vld [vmem:[%s1334 + $0x34] sm:$0xf]
        %v1547 = vld [vmem:[%s1334 + $0x38] sm:$0x1]
        %v1548 = vld [vmem:[%s1334 + $0x3c] sm:$0xf]
        %v1549 = vld [vmem:[%s1334 + $0x40] sm:$0xf]
        %v1550 = vld [vmem:[%s1334 + $0x44] sm:$0x1]
        %v1551 = vld [vmem:[%s1334 + $0x48] sm:$0xf]
        %v1552 = vld [vmem:[%s1334 + $0x4c] sm:$0xf]
        %v1553 = vld [vmem:[%s1334 + $0x50] sm:$0x1]
        %v1554 = vld [vmem:[%s1334 + $0x54] sm:$0xf]
        %v1555 = vld [vmem:[%s1334 + $0x58] sm:$0xf]
        %v1556 = vld [vmem:[%s1334 + $0x5c] sm:$0x1]
        %v1558 = vshrl.u32 %v1533, 16
        %v1560 = vrot.slane %v1558, 4
        %v1561 = vshll.u32 %v1533, 16
        %v1563 = vrot.slane %v1561, 5
        %v1564 = vor.u32 %v1560, %v1563
        %v1565 = vrot.slane %v1564, 4
        %v1567 = vshll.u32 %v1534, 16
        %v1569 = vrot.slane %v1567, 5
        %v1570 = vsel %vm244, %v1565, %v1569
        %v1571 = vshrl.u32 %v1534, 16
        %v1573 = vrot.slane %v1571, 4
        %v1574 = vor.u32 %v1573, %v1569
        %v1575 = vrot.slane %v1574, 4
        %v1577 = vshll.u32 %v1535, 16
        %v1579 = vrot.slane %v1577, 5
        %v1580 = vsel %vm244, %v1575, %v1579
        %v1582 = vshrl.u32 %v1536, 16
        %v1584 = vrot.slane %v1582, 4
        %v1585 = vshll.u32 %v1536, 16
        %v1587 = vrot.slane %v1585, 5
        %v1588 = vor.u32 %v1584, %v1587
        %v1589 = vrot.slane %v1588, 4
        %v1591 = vshll.u32 %v1537, 16
        %v1593 = vrot.slane %v1591, 5
        %v1594 = vsel %vm244, %v1589, %v1593
        %v1595 = vshrl.u32 %v1537, 16
        %v1597 = vrot.slane %v1595, 4
        %v1598 = vor.u32 %v1597, %v1593
        %v1599 = vrot.slane %v1598, 4
        %v1601 = vshll.u32 %v1538, 16
        %v1603 = vrot.slane %v1601, 5
        %v1604 = vsel %vm244, %v1599, %v1603
        %v1606 = vshrl.u32 %v1539, 16
        %v1608 = vrot.slane %v1606, 4
        %v1609 = vshll.u32 %v1539, 16
        %v1611 = vrot.slane %v1609, 5
        %v1612 = vor.u32 %v1608, %v1611
        %v1613 = vrot.slane %v1612, 4
        %v1615 = vshll.u32 %v1540, 16
        %v1617 = vrot.slane %v1615, 5
        %v1618 = vsel %vm244, %v1613, %v1617
        %v1619 = vshrl.u32 %v1540, 16
        %v1621 = vrot.slane %v1619, 4
        %v1622 = vor.u32 %v1621, %v1617
        %v1623 = vrot.slane %v1622, 4
        %v1625 = vshll.u32 %v1541, 16
        %v1627 = vrot.slane %v1625, 5
        %v1628 = vsel %vm244, %v1623, %v1627
        %v1630 = vshrl.u32 %v1542, 16
        %v1632 = vrot.slane %v1630, 4
        %v1633 = vshll.u32 %v1542, 16
        %v1635 = vrot.slane %v1633, 5
        %v1636 = vor.u32 %v1632, %v1635
        %v1637 = vrot.slane %v1636, 4
        %v1639 = vshll.u32 %v1543, 16
        %v1641 = vrot.slane %v1639, 5
        %v1642 = vsel %vm244, %v1637, %v1641
        %v1643 = vshrl.u32 %v1543, 16
        %v1645 = vrot.slane %v1643, 4
        %v1646 = vor.u32 %v1645, %v1641
        %v1647 = vrot.slane %v1646, 4
        %v1649 = vshll.u32 %v1544, 16
        %v1651 = vrot.slane %v1649, 5
        %v1652 = vsel %vm244, %v1647, %v1651
        %v1654 = vshrl.u32 %v1545, 16
        %v1656 = vrot.slane %v1654, 4
        %v1657 = vshll.u32 %v1545, 16
        %v1659 = vrot.slane %v1657, 5
        %v1660 = vor.u32 %v1656, %v1659
        %v1661 = vrot.slane %v1660, 4
        %v1663 = vshll.u32 %v1546, 16
        %v1665 = vrot.slane %v1663, 5
        %v1666 = vsel %vm244, %v1661, %v1665
        %v1667 = vshrl.u32 %v1546, 16
        %v1669 = vrot.slane %v1667, 4
        %v1670 = vor.u32 %v1669, %v1665
        %v1671 = vrot.slane %v1670, 4
        %v1673 = vshll.u32 %v1547, 16
        %v1675 = vrot.slane %v1673, 5
        %v1676 = vsel %vm244, %v1671, %v1675
        %v1678 = vshrl.u32 %v1548, 16
        %v1680 = vrot.slane %v1678, 4
        %v1681 = vshll.u32 %v1548, 16
        %v1683 = vrot.slane %v1681, 5
        %v1684 = vor.u32 %v1680, %v1683
        %v1685 = vrot.slane %v1684, 4
        %v1687 = vshll.u32 %v1549, 16
        %v1689 = vrot.slane %v1687, 5
        %v1690 = vsel %vm244, %v1685, %v1689
        %v1691 = vshrl.u32 %v1549, 16
        %v1693 = vrot.slane %v1691, 4
        %v1694 = vor.u32 %v1693, %v1689
        %v1695 = vrot.slane %v1694, 4
        %v1697 = vshll.u32 %v1550, 16
        %v1699 = vrot.slane %v1697, 5
        %v1700 = vsel %vm244, %v1695, %v1699
        %v1702 = vshrl.u32 %v1551, 16
        %v1704 = vrot.slane %v1702, 4
        %v1705 = vshll.u32 %v1551, 16
        %v1707 = vrot.slane %v1705, 5
        %v1708 = vor.u32 %v1704, %v1707
        %v1709 = vrot.slane %v1708, 4
        %v1711 = vshll.u32 %v1552, 16
        %v1713 = vrot.slane %v1711, 5
        %v1714 = vsel %vm244, %v1709, %v1713
        %v1715 = vshrl.u32 %v1552, 16
        %v1717 = vrot.slane %v1715, 4
        %v1718 = vor.u32 %v1717, %v1713
        %v1719 = vrot.slane %v1718, 4
        %v1721 = vshll.u32 %v1553, 16
        %v1723 = vrot.slane %v1721, 5
        %v1724 = vsel %vm244, %v1719, %v1723
        %v1726 = vshrl.u32 %v1554, 16
        %v1728 = vrot.slane %v1726, 4
        %v1729 = vshll.u32 %v1554, 16
        %v1731 = vrot.slane %v1729, 5
        %v1732 = vor.u32 %v1728, %v1731
        %v1733 = vrot.slane %v1732, 4
        %v1735 = vshll.u32 %v1555, 16
        %v1737 = vrot.slane %v1735, 5
        %v1738 = vsel %vm244, %v1733, %v1737
        %v1739 = vshrl.u32 %v1555, 16
        %v1741 = vrot.slane %v1739, 4
        %v1742 = vor.u32 %v1741, %v1737
        %v1743 = vrot.slane %v1742, 4
        %v1745 = vshll.u32 %v1556, 16
        %v1747 = vrot.slane %v1745, 5
        %v1748 = vsel %vm244, %v1743, %v1747
        %s1749 = scalar_lea.vmem [#allocation5], 20
        %v1750 = vld [vmem:[%s1749] sm:$0xf]
        %v1751 = vunpack.c.l.b16 %v1570
        %v1752 = vunpack.c.l.b16 %v1580
        %v1753 = vunpack.c.l.b16 %v1594
        %v1754 = vunpack.c.l.b16 %v1604
        %v1755 = vunpack.c.l.b16 %v1618
        %v1756 = vunpack.c.l.b16 %v1628
        %v1757 = vunpack.c.l.b16 %v1642
        %v1758 = vunpack.c.l.b16 %v1652
        %v1759 = vunpack.c.l.b16 %v1666
        %v1760 = vunpack.c.l.b16 %v1676
        %v1761 = vunpack.c.l.b16 %v1690
        %v1762 = vunpack.c.l.b16 %v1700
        %v1763 = vunpack.c.l.b16 %v1714
        %v1764 = vunpack.c.l.b16 %v1724
        %v1765 = vunpack.c.l.b16 %v1738
        %v1766 = vunpack.c.l.b16 %v1748
        %v1767 = vpack.c.b16 %v1752, %v1751
        %v1768 = vpack.c.b16 %v1754, %v1753
        %v1769 = vpack.c.b16 %v1756, %v1755
        %v1770 = vpack.c.b16 %v1758, %v1757
        %v1771 = vpack.c.b16 %v1760, %v1759
        %v1772 = vpack.c.b16 %v1762, %v1761
        %v1773 = vpack.c.b16 %v1764, %v1763
        %v1774 = vpack.c.b16 %v1766, %v1765
        %v1776 = vsel %vm463, %v1767, 0
        %v1779 = vsel %vm463, %v1768, 0
        %v1782 = vsel %vm463, %v1769, 0
        %v1785 = vsel %vm463, %v1770, 0
        %v1788 = vsel %vm463, %v1771, 0
        %v1791 = vsel %vm463, %v1772, 0
        %v1794 = vsel %vm463, %v1773, 0
        %v1797 = vsel %vm463, %v1774, 0
        %v1800 = vsel %vm488, %v1750, 0
        %1802 = vmatprep.subr.bf16.mxu0 0
        %1803 = vmatpush1.bf16.msra.mxu0 %v1800
        %1804 = vmatprep.subr.bf16.mxu0 0
        %1805 = vmatpush1.bf16.msra.mxu0 0
        %1806 = vmatprep.subr.bf16.mxu0 0
        %1807 = vmatpush1.bf16.msra.mxu0 0
        %1808 = vmatprep.subr.bf16.mxu0 0
        %1809 = vmatpush1.bf16.msra.mxu0 0
        %1810 = vmatprep.subr.bf16.mxu0 0
        %1811 = vmatpush1.bf16.msra.mxu0 0
        %1812 = vmatprep.subr.bf16.mxu0 0
        %1813 = vmatpush1.bf16.msra.mxu0 0
        %1814 = vmatprep.subr.bf16.mxu0 0
        %1815 = vmatpush1.bf16.msra.mxu0 0
        %1816 = vmatprep.subr.bf16.mxu0 0
        %1817 = vmatpush1.bf16.msra.mxu0 0
        %1818 = vmatprep.subr.bf16.mxu0 0
        %1819 = vmatpush1.bf16.msra.mxu0 0
        %1820 = vmatprep.subr.bf16.mxu0 0
        %1821 = vmatpush1.bf16.msra.mxu0 0
        %1822 = vmatprep.subr.bf16.mxu0 0
        %1823 = vmatpush1.bf16.msra.mxu0 0
        %1824 = vmatprep.subr.bf16.mxu0 0
        %1825 = vmatpush1.bf16.msra.mxu0 0
        %1826 = vmatprep.subr.bf16.mxu0 0
        %1827 = vmatpush1.bf16.msra.mxu0 0
        %1828 = vmatprep.subr.bf16.mxu0 0
        %1829 = vmatpush1.bf16.msra.mxu0 0
        %1830 = vmatprep.subr.bf16.mxu0 0
        %1831 = vmatpush1.bf16.msra.mxu0 0
        %1832 = vmatprep.subr.bf16.mxu0 0
        %1833 = vmatpush1.bf16.msra.mxu0 0
        %1834 = vmatprep.mubr.bf16.mxu0 0
        %1835 = vmatmul.mubr.bf16.gmra.mrb[0].mxu0 %v1776
        %v1836 = vpop.f32.mrb[0].mxu0
        %v1837 = vadd.f32 0.0, %v1836
        %v1838 = vpop.f32.mrb[0].mxu0
        %v1839 = vpop.f32.mrb[0].mxu0
        %v1840 = vadd.f32 0.0, %v1839
        %v1841 = vpop.f32.mrb[0].mxu0
        %1842 = vmatprep.mubr.bf16.mxu0 0
        %1843 = vmatmul.mubr.bf16.gmra.mrb[0].mxu0 %v1779
        %v1844 = vpop.f32.mrb[0].mxu0
        %v1845 = vadd.f32 0.0, %v1844
        %v1846 = vpop.f32.mrb[0].mxu0
        %v1847 = vpop.f32.mrb[0].mxu0
        %v1848 = vadd.f32 0.0, %v1847
        %v1849 = vpop.f32.mrb[0].mxu0
        %1850 = vmatprep.mubr.bf16.mxu0 0
        %1851 = vmatmul.mubr.bf16.gmra.mrb[0].mxu0 %v1782
        %v1852 = vpop.f32.mrb[0].mxu0
        %v1853 = vadd.f32 0.0, %v1852
        %v1854 = vpop.f32.mrb[0].mxu0
        %v1855 = vpop.f32.mrb[0].mxu0
        %v1856 = vadd.f32 0.0, %v1855
        %v1857 = vpop.f32.mrb[0].mxu0
        %1858 = vmatprep.mubr.bf16.mxu0 0
        %1859 = vmatmul.mubr.bf16.gmra.mrb[0].mxu0 %v1785
        %v1860 = vpop.f32.mrb[0].mxu0
        %v1861 = vadd.f32 0.0, %v1860
        %v1862 = vpop.f32.mrb[0].mxu0
        %v1863 = vpop.f32.mrb[0].mxu0
        %v1864 = vadd.f32 0.0, %v1863
        %v1865 = vpop.f32.mrb[0].mxu0
        %1866 = vmatprep.mubr.bf16.mxu0 0
        %1867 = vmatmul.mubr.bf16.gmra.mrb[0].mxu0 %v1788
        %v1868 = vpop.f32.mrb[0].mxu0
        %v1869 = vadd.f32 0.0, %v1868
        %v1870 = vpop.f32.mrb[0].mxu0
        %v1871 = vpop.f32.mrb[0].mxu0
        %v1872 = vadd.f32 0.0, %v1871
        %v1873 = vpop.f32.mrb[0].mxu0
        %1874 = vmatprep.mubr.bf16.mxu0 0
        %1875 = vmatmul.mubr.bf16.gmra.mrb[0].mxu0 %v1791
        %v1876 = vpop.f32.mrb[0].mxu0
        %v1877 = vadd.f32 0.0, %v1876
        %v1878 = vpop.f32.mrb[0].mxu0
        %v1879 = vpop.f32.mrb[0].mxu0
        %v1880 = vadd.f32 0.0, %v1879
        %v1881 = vpop.f32.mrb[0].mxu0
        %1882 = vmatprep.mubr.bf16.mxu0 0
        %1883 = vmatmul.mubr.bf16.gmra.mrb[0].mxu0 %v1794
        %v1884 = vpop.f32.mrb[0].mxu0
        %v1885 = vadd.f32 0.0, %v1884
        %v1886 = vpop.f32.mrb[0].mxu0
        %v1887 = vpop.f32.mrb[0].mxu0
        %v1888 = vadd.f32 0.0, %v1887
        %v1889 = vpop.f32.mrb[0].mxu0
        %1890 = vmatprep.mubr.bf16.mxu0 0
        %1891 = vmatmul.mubr.bf16.gmra.mrb[0].mxu0 %v1797
        %v1892 = vpop.f32.mrb[0].mxu0
        %v1893 = vadd.f32 0.0, %v1892
        %v1894 = vpop.f32.mrb[0].mxu0
        %v1895 = vpop.f32.mrb[0].mxu0
        %v1896 = vadd.f32 0.0, %v1895
        %v1897 = vpop.f32.mrb[0].mxu0
        %1898 = vdwg.mxu0
        %v1899 = vadd.f32 %v1517, %v1837
        %v1900 = vadd.f32 %v1518, %v1840
        %v1901 = vadd.f32 %v1519, %v1845
        %v1902 = vadd.f32 %v1520, %v1848
        %v1903 = vadd.f32 %v1521, %v1853
        %v1904 = vadd.f32 %v1522, %v1856
        %v1905 = vadd.f32 %v1523, %v1861
        %v1906 = vadd.f32 %v1524, %v1864
        %v1907 = vadd.f32 %v1525, %v1869
        %v1908 = vadd.f32 %v1526, %v1872
        %v1909 = vadd.f32 %v1527, %v1877
        %v1910 = vadd.f32 %v1528, %v1880
        %v1911 = vadd.f32 %v1529, %v1885
        %v1912 = vadd.f32 %v1530, %v1888
        %v1913 = vadd.f32 %v1531, %v1893
        %v1914 = vadd.f32 %v1532, %v1896
        %v1915 = vld [vmem:[#allocation7] sm:$0x1]
        %v1917 = vlaneseq
        %v1918 = vshrl.u32 %v1917, 7
        %v1919 = vsub.s32 0, %v1918
        %v1920 = vrot.slane %v1915, %v1919
        %v1922 = vadd.f32 %v1899, %v1920
        %v1923 = vadd.f32 %v1900, %v1920
        %v1924 = vadd.f32 %v1901, %v1920
        %v1925 = vadd.f32 %v1902, %v1920
        %v1926 = vadd.f32 %v1903, %v1920
        %v1927 = vadd.f32 %v1904, %v1920
        %v1928 = vadd.f32 %v1905, %v1920
        %v1929 = vadd.f32 %v1906, %v1920
        %v1930 = vadd.f32 %v1907, %v1920
        %v1931 = vadd.f32 %v1908, %v1920
        %v1932 = vadd.f32 %v1909, %v1920
        %v1933 = vadd.f32 %v1910, %v1920
        %v1934 = vadd.f32 %v1911, %v1920
        %v1935 = vadd.f32 %v1912, %v1920
        %v1936 = vadd.f32 %v1913, %v1920
        %v1937 = vadd.f32 %v1914, %v1920
        %1938 = vst [vmem:[%s215] sm:$0xff] %v1922
        %1939 = vst [vmem:[%s215 + $0x8] sm:$0xff] %v1923
        %1940 = vst [vmem:[%s215 + $0x10] sm:$0xff] %v1924
        %1941 = vst [vmem:[%s215 + $0x18] sm:$0xff] %v1925
        %1942 = vst [vmem:[%s215 + $0x20] sm:$0xff] %v1926
        %1943 = vst [vmem:[%s215 + $0x28] sm:$0xff] %v1927
        %1944 = vst [vmem:[%s215 + $0x30] sm:$0xff] %v1928
        %1945 = vst [vmem:[%s215 + $0x38] sm:$0xff] %v1929
        %1946 = vst [vmem:[%s215 + $0x40] sm:$0xff] %v1930
        %1947 = vst [vmem:[%s215 + $0x48] sm:$0xff] %v1931
        %1948 = vst [vmem:[%s215 + $0x50] sm:$0xff] %v1932
        %1949 = vst [vmem:[%s215 + $0x58] sm:$0xff] %v1933
        %1950 = vst [vmem:[%s215 + $0x60] sm:$0xff] %v1934
        %1951 = vst [vmem:[%s215 + $0x68] sm:$0xff] %v1935
        %1952 = vst [vmem:[%s215 + $0x70] sm:$0xff] %v1936
        %1953 = vst [vmem:[%s215 + $0x78] sm:$0xff] %v1937
        %s1954 = sand.u32 %s97, 1
        %s1955 = scalar_lea.sflag [#allocation4], %s1954
        %s1956 = sand.u32 %s97, 1
        %s1957 = smul.addr %s1956, 128
        %s1958 = scalar_lea.vmem [#allocation8], %s1957
        // Predicated region
        $region45: #{_conv2d_forward_nchw.1} parent=31 // pred_check
          %p1959 = pneg %p107
        $region46: #{_conv2d_forward_nchw.1} parent=31 // pred_check_branch
          %1961 = sbr.rel (%p1959) target = $region48
        $region47: #{_conv2d_forward_nchw.1} parent=31 // pred_region
          %s1963 = ssub.s32 2048, 2048
          %1964 = vsyncadd %s1955, %s1963
          %s1965 = smul.addr %s21, 16
          %s1966 = smul.addr %s1965, 128
          %s1967 = scalar_lea.hbm %s3, %s1966
          %s1968 = sshll.u32 %s1958, 4
          %s1969 = int_to_ptr.vmem [resolvable:$true] %s1968
          %1974 = dma.vmem_to_hbm [thread:$0]  %s1969, 2048, %s1967, %s1955, 128, 128, 8
        $region48: #{_conv2d_forward_nchw.1} parent=31 // pred_fallthru
          _
      $region32: #{_conv2d_forward_nchw.1} parent=5 // pred_fallthru
        _
      %p1975 = scmp.le.s32.totalorder 2, %s16
      // Predicated region
      $region49: #{_conv2d_forward_nchw.1} parent=5 // pred_check
        %p1976 = pneg %p1975
      $region50: #{_conv2d_forward_nchw.1} parent=5 // pred_check_branch
        %1978 = sbr.rel (%p1976) target = $region52
      $region51: #{_conv2d_forward_nchw.1} parent=5 // pred_region
        %s1979 = ssub.s32 %s16, 2
        // Predicated region
        $region53: #{_conv2d_forward_nchw.1} parent=51 // pred_check
          %p1980 = pneg %p113
        $region54: #{_conv2d_forward_nchw.1} parent=51 // pred_check_branch
          %1982 = sbr.rel (%p1980) target = $region56
        $region55: #{_conv2d_forward_nchw.1} parent=51 // pred_region
          %s1983 = sand.u32 %s98, 1
          %s1984 = scalar_lea.sflag [#allocation4], %s1983
          %s1985 = sand.u32 %s98, 1
          %s1986 = smul.addr %s1985, 128
          %s1987 = scalar_lea.vmem [#allocation8], %s1986
          %1988 = dma.done %s1984, 2048
        $region56: #{_conv2d_forward_nchw.1} parent=51 // pred_fallthru
          _
      $region52: #{_conv2d_forward_nchw.1} parent=5 // pred_fallthru
        _
    $region6: #{_conv2d_forward_nchw.1} parent=1 // loop_footer
      %s20 = sadd.s32 1, %s16
    $region7: #{_conv2d_forward_nchw.1} parent=1 // loop_footer_branch
      %15 = sbr.rel target = $region3
    $region8: #{_conv2d_forward_nchw.1} parent=1 // loop_exit
      _
    %1989 = vsyncpa [#allocation3], 1
    %s1990 = scalar_lea.sflag [#allocation3], 1
    %1991 = vsyncpa %s1990, 1
    %1992 = vsyncpa [#allocation6], 1
    %1993 = vsyncpa [#allocation4], 1
    %s1994 = scalar_lea.sflag [#allocation4], 1
    %1995 = vsyncpa %s1994, 1

</llo_original>
